<compile_context>
chip_gen: v7x
topology: tpu7x:2x2x1
jax: 0.10.0
libtpu: 0.0.40
codegen_flags: <defaults>
</compile_context>

<pallas_src>
import numpy as np
import jax
import jax.numpy as jnp
from jax.experimental import pallas as pl
from jax.experimental.pallas import tpu as pltpu

# ----------------------------- model config (small) ------------------------
NC = 1            # input channels
NDF = 8           # base feature width
W = 16            # image size
LATENT = 16       # latent size
NB_BLOCKS = int(round(np.log(W) / np.log(2))) - 3   # = 1 for W=16
WL = W // (2 ** (NB_BLOCKS + 1))                     # = 4
NF_FINAL = NDF * (2 ** NB_BLOCKS)                    # = 16
POST_LATENT_SHAPE = (NF_FINAL, WL, WL)               # (16, 4, 4)

TB = 8            # batch tile (sublane aligned); >1 tile => parallel grid blocks


def _round_up(x, m):
    return (x + m - 1) // m * m


# ------------------- static Toeplitz index maps (numpy, once) ---------------
def _conv_toeplitz_indices(cin, h, w, cout, k, stride, pad):
    ho = (h + 2 * pad - k) // stride + 1
    wo = (w + 2 * pad - k) // stride + 1
    co, ci, ki, kj, oh, ow = np.indices((cout, cin, k, k, ho, wo))
    ih = stride * oh + ki - pad
    iw = stride * ow + kj - pad
    ok = (ih >= 0) & (ih < h) & (iw >= 0) & (iw < w)
    rows = (ci * h + ih) * w + iw
    cols = (co * ho + oh) * wo + ow
    widx = ((co * cin + ci) * k + ki) * k + kj
    shape = (cin * h * w, cout * ho * wo)
    return (np.asarray(rows[ok], np.int32), np.asarray(cols[ok], np.int32),
            np.asarray(widx[ok], np.int32), shape, ho * wo)


def _convT_toeplitz_indices(cin, hin, win, cout, k, stride, pad):
    hout = (hin - 1) * stride - 2 * pad + k
    wout = (win - 1) * stride - 2 * pad + k
    ci, co, ki, kj, ih, iw = np.indices((cin, cout, k, k, hin, win))
    oh = stride * ih + ki - pad
    ow = stride * iw + kj - pad
    ok = (oh >= 0) & (oh < hout) & (ow >= 0) & (ow < wout)
    rows = (ci * hin + ih) * win + iw
    cols = (co * hout + oh) * wout + ow
    widx = ((ci * cout + co) * k + ki) * k + kj
    shape = (cin * hin * win, cout * hout * wout)
    return (np.asarray(rows[ok], np.int32), np.asarray(cols[ok], np.int32),
            np.asarray(widx[ok], np.int32), shape, hout * wout)


_ENC1 = _conv_toeplitz_indices(NC, W, W, NDF, 4, 2, 1)                       # (256, 512)
_ENC2 = _conv_toeplitz_indices(NDF, W // 2, W // 2, NF_FINAL, 4, 2, 1)       # (512, 256)
_DEC1 = _convT_toeplitz_indices(NF_FINAL, WL, WL, NF_FINAL // 2, 4, 2, 1)    # (256, 512)
_DEC2 = _convT_toeplitz_indices(NF_FINAL // 2, 2 * WL, 2 * WL, NC, 4, 2, 1)  # (512, 256)


def _toeplitz(w, idx):
    rows, cols, widx, shape, _ = idx
    m = jnp.zeros(shape, jnp.float32).at[rows, cols].set(w.reshape(-1)[widx])
    return m.astype(jnp.bfloat16)


def _expand_bias(b, n_spatial):
    # per-output-channel bias replicated over the spatial positions (cout-major)
    return jnp.repeat(b, n_spatial).reshape(1, -1).astype(jnp.float32)


# ----------------------------- fused Pallas kernel ---------------------------
def _fused_ae_kernel(x_ref, eps_ref,
                     m1_ref, b1_ref, m2_ref, b2_ref,
                     wmu_ref, bmu_ref, wlv_ref, blv_ref,
                     wpost_ref, bpost_ref,
                     m3_ref, b3_ref, m4_ref, b4_ref,
                     xrec_ref, mu_ref, lv_ref):
    def mm(a, w_ref, b_ref):
        # bf16 MXU matmul, f32 accumulation, f32 bias/activation epilogue
        return jnp.dot(a.astype(jnp.bfloat16), w_ref[...],
                       preferred_element_type=jnp.float32) + b_ref[...]

    h = x_ref[...]                                         # (TB, NC*W*W) f32
    h = jnp.maximum(mm(h, m1_ref, b1_ref), 0.0)            # conv1 + ReLU
    h = jnp.maximum(mm(h, m2_ref, b2_ref), 0.0)            # conv2 + ReLU
    mu = mm(h, wmu_ref, bmu_ref)                           # latent Linear (mu half)
    lv = mm(h, wlv_ref, blv_ref)                           # latent Linear (logvar half)
    z = mu + eps_ref[...] * jnp.exp(0.5 * lv)              # fused VAE reparam (EUP exp)
    p = mm(z, wpost_ref, bpost_ref)                        # post_latent Linear
    d = jnp.maximum(mm(p, m3_ref, b3_ref), 0.0)            # convT1 + ReLU
    xr = jax.nn.sigmoid(mm(d, m4_ref, b4_ref))             # convT2 + Sigmoid
    xrec_ref[...] = xr
    mu_ref[...] = mu
    lv_ref[...] = lv


# ----------------------------- parameters -----------------------------------
def init_params(key):
    ks = jax.random.split(key, 12)

    def conv_w(k, shape):                   # weights_init: normal(0, 0.02)
        return 0.02 * jax.random.normal(k, shape, jnp.float32)

    def xavier(k, out_f, in_f):             # Linear: xavier_uniform_
        bound = float(np.sqrt(6.0 / (in_f + out_f)))
        return jax.random.uniform(k, (out_f, in_f), jnp.float32, -bound, bound)

    def conv_b(k, fan_in, n):               # PyTorch default conv bias init
        bound = 1.0 / float(np.sqrt(fan_in))
        return jax.random.uniform(k, (n,), jnp.float32, -bound, bound)

    nf = NDF
    params = {
        # encoder
        "enc_w1": conv_w(ks[0], (nf, NC, 4, 4)),
        "enc_b1": conv_b(ks[1], NC * 16, nf),
        "enc_w2": conv_w(ks[2], (nf * 2, nf, 4, 4)),
        "enc_b2": conv_b(ks[3], nf * 16, nf * 2),
        # latent / post_latent linear layers (PyTorch Linear: weight (out,in))
        "lat_w": xavier(ks[4], LATENT * 2, NF_FINAL * WL * WL),
        "lat_b": jnp.zeros((LATENT * 2,), jnp.float32),
        "post_w": xavier(ks[5], NF_FINAL * WL * WL, LATENT),
        "post_b": jnp.zeros((NF_FINAL * WL * WL,), jnp.float32),
        # decoder (ConvTranspose2d weight layout: (in, out, k, k))
        "dec_w1": conv_w(ks[6], (NF_FINAL, NF_FINAL // 2, 4, 4)),
        "dec_b1": conv_b(ks[7], NF_FINAL * 16, NF_FINAL // 2),
        "dec_w2": conv_w(ks[8], (NF_FINAL // 2, NC, 4, 4)),
        "dec_b2": conv_b(ks[9], (NF_FINAL // 2) * 16, NC),
    }
    return params


# ----------------------------- forward pass ---------------------------------
def ae_forward(params, x, eps):
    B = x.shape[0]
    xdim = NC * W * W

    # weight-side preprocessing (tiny scatters, data independent)
    m1 = _toeplitz(params["enc_w1"], _ENC1)
    b1 = _expand_bias(params["enc_b1"], _ENC1[4])
    m2 = _toeplitz(params["enc_w2"], _ENC2)
    b2 = _expand_bias(params["enc_b2"], _ENC2[4])
    m3 = _toeplitz(params["dec_w1"], _DEC1)
    b3 = _expand_bias(params["dec_b1"], _DEC1[4])
    m4 = _toeplitz(params["dec_w2"], _DEC2)
    b4 = _expand_bias(params["dec_b2"], _DEC2[4])

    wlat = params["lat_w"]                                   # (2*LATENT, 256)
    wmu = wlat[:LATENT, :].T.astype(jnp.bfloat16)            # (256, LATENT)
    wlv = wlat[LATENT:, :].T.astype(jnp.bfloat16)
    bmu = params["lat_b"][:LATENT].reshape(1, -1).astype(jnp.float32)
    blv = params["lat_b"][LATENT:].reshape(1, -1).astype(jnp.float32)
    wpost = params["post_w"].T.astype(jnp.bfloat16)          # (LATENT, 256)
    bpost = params["post_b"].reshape(1, -1).astype(jnp.float32)

    # pad batch to a multiple of the 8-row tile (sublane alignment)
    Bp = _round_up(B, TB)
    x_p = jnp.zeros((Bp, xdim), jnp.float32).at[:B].set(x.reshape(B, xdim))
    eps_p = jnp.zeros((Bp, LATENT), jnp.float32).at[:B].set(eps)

    grid = (Bp // TB,)
    row_spec = lambda n: pl.BlockSpec((TB, n), lambda i: (i, 0))
    full_spec = lambda arr: pl.BlockSpec(arr.shape, lambda i: (0, 0))

    xrec_p, mu_p, lv_p = pl.pallas_call(
        _fused_ae_kernel,
        out_shape=(jax.ShapeDtypeStruct((Bp, xdim), jnp.float32),
                   jax.ShapeDtypeStruct((Bp, LATENT), jnp.float32),
                   jax.ShapeDtypeStruct((Bp, LATENT), jnp.float32)),
        grid=grid,
        in_specs=[row_spec(xdim), row_spec(LATENT),
                  full_spec(m1), full_spec(b1),
                  full_spec(m2), full_spec(b2),
                  full_spec(wmu), full_spec(bmu),
                  full_spec(wlv), full_spec(blv),
                  full_spec(wpost), full_spec(bpost),
                  full_spec(m3), full_spec(b3),
                  full_spec(m4), full_spec(b4)],
        out_specs=(row_spec(xdim), row_spec(LATENT), row_spec(LATENT)),
        compiler_params=pltpu.CompilerParams(dimension_semantics=("parallel",)),
    )(x_p, eps_p, m1, b1, m2, b2, wmu, bmu, wlv, blv, wpost, bpost,
      m3, b3, m4, b4)

    xrec = xrec_p[:B].reshape(B, NC, W, W)
    return xrec, mu_p[:B], lv_p[:B]


if __name__ == "__main__":
    key = jax.random.PRNGKey(0)
    k_param, k_x, k_eps = jax.random.split(key, 3)
    params = init_params(k_param)
    x = jax.random.normal(k_x, (2, NC, W, W), jnp.float32)       # (2, 1, 16, 16)
    eps = jax.random.normal(k_eps, (2, LATENT), jnp.float32)     # eps ~ randn_like(std)

    fwd = jax.jit(ae_forward)
    xrec, mu, logvar = fwd(params, x, eps)
    jax.block_until_ready((xrec, mu, logvar))

    assert xrec.shape == (2, NC, W, W)
    assert mu.shape == (2, LATENT) and logvar.shape == (2, LATENT)
    assert bool(jnp.all(jnp.isfinite(xrec)))
    assert bool(jnp.all(jnp.isfinite(mu))) and bool(jnp.all(jnp.isfinite(logvar)))
    assert bool(jnp.all((xrec >= 0.0) & (xrec <= 1.0)))   # sigmoid output range
    print("KERNEL_OK")
</pallas_src>

<mosaic_0001>
module attributes {stable_mosaic.version = 11 : i64} {
  func.func @_fused_ae_kernel(%arg0: i32, %arg1: memref<8x256xf32, #tpu.memory_space<vmem>>, %arg2: memref<8x16xf32, #tpu.memory_space<vmem>>, %arg3: memref<256x512xbf16, #tpu.memory_space<vmem>>, %arg4: memref<1x512xf32, #tpu.memory_space<vmem>>, %arg5: memref<512x256xbf16, #tpu.memory_space<vmem>>, %arg6: memref<1x256xf32, #tpu.memory_space<vmem>>, %arg7: memref<256x16xbf16, #tpu.memory_space<vmem>>, %arg8: memref<1x16xf32, #tpu.memory_space<vmem>>, %arg9: memref<256x16xbf16, #tpu.memory_space<vmem>>, %arg10: memref<1x16xf32, #tpu.memory_space<vmem>>, %arg11: memref<16x256xbf16, #tpu.memory_space<vmem>>, %arg12: memref<1x256xf32, #tpu.memory_space<vmem>>, %arg13: memref<256x512xbf16, #tpu.memory_space<vmem>>, %arg14: memref<1x512xf32, #tpu.memory_space<vmem>>, %arg15: memref<512x256xbf16, #tpu.memory_space<vmem>>, %arg16: memref<1x256xf32, #tpu.memory_space<vmem>>, %arg17: memref<8x256xf32, #tpu.memory_space<vmem>>, %arg18: memref<8x16xf32, #tpu.memory_space<vmem>>, %arg19: memref<8x16xf32, #tpu.memory_space<vmem>>) attributes {dimension_semantics = [#tpu.dimension_semantics<parallel>], iteration_bounds = array<i64: 1>, scalar_prefetch = 0 : i64, scratch_operands = 0 : i64, tpu.core_type = #tpu.core_type<tc>, window_params = [{transform_indices = @transform_0, window_bounds = array<i64: 8, 256>}, {transform_indices = @transform_1, window_bounds = array<i64: 8, 16>}, {pipeline_mode = #tpu.pipeline_mode<synchronous>, transform_indices = @transform_2, window_bounds = array<i64: 256, 512>}, {pipeline_mode = #tpu.pipeline_mode<synchronous>, transform_indices = @transform_3, window_bounds = array<i64: 1, 512>}, {pipeline_mode = #tpu.pipeline_mode<synchronous>, transform_indices = @transform_4, window_bounds = array<i64: 512, 256>}, {pipeline_mode = #tpu.pipeline_mode<synchronous>, transform_indices = @transform_5, window_bounds = array<i64: 1, 256>}, {pipeline_mode = #tpu.pipeline_mode<synchronous>, transform_indices = @transform_6, window_bounds = array<i64: 256, 16>}, {pipeline_mode = #tpu.pipeline_mode<synchronous>, transform_indices = @transform_7, window_bounds = array<i64: 1, 16>}, {pipeline_mode = #tpu.pipeline_mode<synchronous>, transform_indices = @transform_8, window_bounds = array<i64: 256, 16>}, {pipeline_mode = #tpu.pipeline_mode<synchronous>, transform_indices = @transform_9, window_bounds = array<i64: 1, 16>}, {pipeline_mode = #tpu.pipeline_mode<synchronous>, transform_indices = @transform_10, window_bounds = array<i64: 16, 256>}, {pipeline_mode = #tpu.pipeline_mode<synchronous>, transform_indices = @transform_11, window_bounds = array<i64: 1, 256>}, {pipeline_mode = #tpu.pipeline_mode<synchronous>, transform_indices = @transform_12, window_bounds = array<i64: 256, 512>}, {pipeline_mode = #tpu.pipeline_mode<synchronous>, transform_indices = @transform_13, window_bounds = array<i64: 1, 512>}, {pipeline_mode = #tpu.pipeline_mode<synchronous>, transform_indices = @transform_14, window_bounds = array<i64: 512, 256>}, {pipeline_mode = #tpu.pipeline_mode<synchronous>, transform_indices = @transform_15, window_bounds = array<i64: 1, 256>}, {transform_indices = @transform_16, window_bounds = array<i64: 8, 256>}, {transform_indices = @transform_17, window_bounds = array<i64: 8, 16>}, {transform_indices = @transform_18, window_bounds = array<i64: 8, 16>}]} {
    %c0 = arith.constant 0 : index
    %c0_0 = arith.constant 0 : index
    %0 = vector.load %arg1[%c0, %c0_0] : memref<8x256xf32, #tpu.memory_space<vmem>>, vector<8x256xf32>
    %1 = arith.truncf %0 : vector<8x256xf32> to vector<8x256xbf16>
    %c0_1 = arith.constant 0 : index
    %c0_2 = arith.constant 0 : index
    %2 = vector.load %arg3[%c0_1, %c0_2] : memref<256x512xbf16, #tpu.memory_space<vmem>>, vector<256x512xbf16>
    %cst = arith.constant dense<0.000000e+00> : vector<8x512xf32>
    %3 = tpu.matmul %1, %2, %cst {dimension_numbers = #tpu.dot_dimension_numbers<[1], [0], [0], [1], [0, 0, 1, 1], [], []>} : vector<8x256xbf16>, vector<256x512xbf16>, vector<8x512xf32> -> vector<8x512xf32>
    %c0_3 = arith.constant 0 : index
    %c0_4 = arith.constant 0 : index
    %4 = vector.load %arg4[%c0_3, %c0_4] : memref<1x512xf32, #tpu.memory_space<vmem>>, vector<1x512xf32>
    %5 = vector.broadcast %4 : vector<1x512xf32> to vector<8x512xf32>
    %6 = arith.addf %3, %5 : vector<8x512xf32>
    %cst_5 = arith.constant 0.000000e+00 : f32
    %7 = vector.broadcast %cst_5 : f32 to vector<8x512xf32>
    %8 = arith.maximumf %6, %7 : vector<8x512xf32>
    %9 = arith.truncf %8 : vector<8x512xf32> to vector<8x512xbf16>
    %c0_6 = arith.constant 0 : index
    %c0_7 = arith.constant 0 : index
    %10 = vector.load %arg5[%c0_6, %c0_7] : memref<512x256xbf16, #tpu.memory_space<vmem>>, vector<512x256xbf16>
    %cst_8 = arith.constant dense<0.000000e+00> : vector<8x256xf32>
    %11 = tpu.matmul %9, %10, %cst_8 {dimension_numbers = #tpu.dot_dimension_numbers<[1], [0], [0], [1], [0, 0, 1, 1], [], []>} : vector<8x512xbf16>, vector<512x256xbf16>, vector<8x256xf32> -> vector<8x256xf32>
    %c0_9 = arith.constant 0 : index
    %c0_10 = arith.constant 0 : index
    %12 = vector.load %arg6[%c0_9, %c0_10] : memref<1x256xf32, #tpu.memory_space<vmem>>, vector<1x256xf32>
    %13 = vector.broadcast %12 : vector<1x256xf32> to vector<8x256xf32>
    %14 = arith.addf %11, %13 : vector<8x256xf32>
    %cst_11 = arith.constant 0.000000e+00 : f32
    %15 = vector.broadcast %cst_11 : f32 to vector<8x256xf32>
    %16 = arith.maximumf %14, %15 : vector<8x256xf32>
    %17 = arith.truncf %16 : vector<8x256xf32> to vector<8x256xbf16>
    %c0_12 = arith.constant 0 : index
    %c0_13 = arith.constant 0 : index
    %18 = vector.load %arg7[%c0_12, %c0_13] : memref<256x16xbf16, #tpu.memory_space<vmem>>, vector<256x16xbf16>
    %cst_14 = arith.constant dense<0.000000e+00> : vector<8x16xf32>
    %19 = tpu.matmul %17, %18, %cst_14 {dimension_numbers = #tpu.dot_dimension_numbers<[1], [0], [0], [1], [0, 0, 1, 1], [], []>} : vector<8x256xbf16>, vector<256x16xbf16>, vector<8x16xf32> -> vector<8x16xf32>
    %c0_15 = arith.constant 0 : index
    %c0_16 = arith.constant 0 : index
    %20 = vector.load %arg8[%c0_15, %c0_16] : memref<1x16xf32, #tpu.memory_space<vmem>>, vector<1x16xf32>
    %21 = vector.broadcast %20 : vector<1x16xf32> to vector<8x16xf32>
    %22 = arith.addf %19, %21 : vector<8x16xf32>
    %23 = arith.truncf %16 : vector<8x256xf32> to vector<8x256xbf16>
    %c0_17 = arith.constant 0 : index
    %c0_18 = arith.constant 0 : index
    %24 = vector.load %arg9[%c0_17, %c0_18] : memref<256x16xbf16, #tpu.memory_space<vmem>>, vector<256x16xbf16>
    %cst_19 = arith.constant dense<0.000000e+00> : vector<8x16xf32>
    %25 = tpu.matmul %23, %24, %cst_19 {dimension_numbers = #tpu.dot_dimension_numbers<[1], [0], [0], [1], [0, 0, 1, 1], [], []>} : vector<8x256xbf16>, vector<256x16xbf16>, vector<8x16xf32> -> vector<8x16xf32>
    %c0_20 = arith.constant 0 : index
    %c0_21 = arith.constant 0 : index
    %26 = vector.load %arg10[%c0_20, %c0_21] : memref<1x16xf32, #tpu.memory_space<vmem>>, vector<1x16xf32>
    %27 = vector.broadcast %26 : vector<1x16xf32> to vector<8x16xf32>
    %28 = arith.addf %25, %27 : vector<8x16xf32>
    %c0_22 = arith.constant 0 : index
    %c0_23 = arith.constant 0 : index
    %29 = vector.load %arg2[%c0_22, %c0_23] : memref<8x16xf32, #tpu.memory_space<vmem>>, vector<8x16xf32>
    %cst_24 = arith.constant 5.000000e-01 : f32
    %30 = vector.broadcast %cst_24 : f32 to vector<8x16xf32>
    %31 = arith.mulf %30, %28 : vector<8x16xf32>
    %32 = math.exp %31 : vector<8x16xf32>
    %33 = arith.mulf %29, %32 : vector<8x16xf32>
    %34 = arith.addf %22, %33 : vector<8x16xf32>
    %35 = arith.truncf %34 : vector<8x16xf32> to vector<8x16xbf16>
    %c0_25 = arith.constant 0 : index
    %c0_26 = arith.constant 0 : index
    %36 = vector.load %arg11[%c0_25, %c0_26] : memref<16x256xbf16, #tpu.memory_space<vmem>>, vector<16x256xbf16>
    %cst_27 = arith.constant dense<0.000000e+00> : vector<8x256xf32>
    %37 = tpu.matmul %35, %36, %cst_27 {dimension_numbers = #tpu.dot_dimension_numbers<[1], [0], [0], [1], [0, 0, 1, 1], [], []>} : vector<8x16xbf16>, vector<16x256xbf16>, vector<8x256xf32> -> vector<8x256xf32>
    %c0_28 = arith.constant 0 : index
    %c0_29 = arith.constant 0 : index
    %38 = vector.load %arg12[%c0_28, %c0_29] : memref<1x256xf32, #tpu.memory_space<vmem>>, vector<1x256xf32>
    %39 = vector.broadcast %38 : vector<1x256xf32> to vector<8x256xf32>
    %40 = arith.addf %37, %39 : vector<8x256xf32>
    %41 = arith.truncf %40 : vector<8x256xf32> to vector<8x256xbf16>
    %c0_30 = arith.constant 0 : index
    %c0_31 = arith.constant 0 : index
    %42 = vector.load %arg13[%c0_30, %c0_31] : memref<256x512xbf16, #tpu.memory_space<vmem>>, vector<256x512xbf16>
    %cst_32 = arith.constant dense<0.000000e+00> : vector<8x512xf32>
    %43 = tpu.matmul %41, %42, %cst_32 {dimension_numbers = #tpu.dot_dimension_numbers<[1], [0], [0], [1], [0, 0, 1, 1], [], []>} : vector<8x256xbf16>, vector<256x512xbf16>, vector<8x512xf32> -> vector<8x512xf32>
    %c0_33 = arith.constant 0 : index
    %c0_34 = arith.constant 0 : index
    %44 = vector.load %arg14[%c0_33, %c0_34] : memref<1x512xf32, #tpu.memory_space<vmem>>, vector<1x512xf32>
    %45 = vector.broadcast %44 : vector<1x512xf32> to vector<8x512xf32>
    %46 = arith.addf %43, %45 : vector<8x512xf32>
    %cst_35 = arith.constant 0.000000e+00 : f32
    %47 = vector.broadcast %cst_35 : f32 to vector<8x512xf32>
    %48 = arith.maximumf %46, %47 : vector<8x512xf32>
    %49 = arith.truncf %48 : vector<8x512xf32> to vector<8x512xbf16>
    %c0_36 = arith.constant 0 : index
    %c0_37 = arith.constant 0 : index
    %50 = vector.load %arg15[%c0_36, %c0_37] : memref<512x256xbf16, #tpu.memory_space<vmem>>, vector<512x256xbf16>
    %cst_38 = arith.constant dense<0.000000e+00> : vector<8x256xf32>
    %51 = tpu.matmul %49, %50, %cst_38 {dimension_numbers = #tpu.dot_dimension_numbers<[1], [0], [0], [1], [0, 0, 1, 1], [], []>} : vector<8x512xbf16>, vector<512x256xbf16>, vector<8x256xf32> -> vector<8x256xf32>
    %c0_39 = arith.constant 0 : index
    %c0_40 = arith.constant 0 : index
    %52 = vector.load %arg16[%c0_39, %c0_40] : memref<1x256xf32, #tpu.memory_space<vmem>>, vector<1x256xf32>
    %53 = vector.broadcast %52 : vector<1x256xf32> to vector<8x256xf32>
    %54 = arith.addf %51, %53 : vector<8x256xf32>
    %55 = arith.negf %54 : vector<8x256xf32>
    %56 = math.exp %55 : vector<8x256xf32>
    %cst_41 = arith.constant 1.000000e+00 : f32
    %57 = vector.broadcast %cst_41 : f32 to vector<8x256xf32>
    %58 = arith.addf %57, %56 : vector<8x256xf32>
    %59 = arith.divf %57, %58 : vector<8x256xf32>
    %c0_42 = arith.constant 0 : index
    %c0_43 = arith.constant 0 : index
    %60 = vector.load %arg17[%c0_42, %c0_43] : memref<8x256xf32, #tpu.memory_space<vmem>>, vector<8x256xf32>
    tpu.vector_store %arg17[%c0_42, %c0_43], %59 {strides = array<i32>} : memref<8x256xf32, #tpu.memory_space<vmem>>, vector<8x256xf32>,
    %c0_44 = arith.constant 0 : index
    %c0_45 = arith.constant 0 : index
    %61 = vector.load %arg18[%c0_44, %c0_45] : memref<8x16xf32, #tpu.memory_space<vmem>>, vector<8x16xf32>
    tpu.vector_store %arg18[%c0_44, %c0_45], %22 {strides = array<i32>} : memref<8x16xf32, #tpu.memory_space<vmem>>, vector<8x16xf32>,
    %c0_46 = arith.constant 0 : index
    %c0_47 = arith.constant 0 : index
    %62 = vector.load %arg19[%c0_46, %c0_47] : memref<8x16xf32, #tpu.memory_space<vmem>>, vector<8x16xf32>
    tpu.vector_store %arg19[%c0_46, %c0_47], %28 {strides = array<i32>} : memref<8x16xf32, #tpu.memory_space<vmem>>, vector<8x16xf32>,
    return
  }
  func.func @transform_0(%arg0: i32) -> (i32, i32) {
    %c0_i32 = arith.constant 0 : i32
    %c0_i32_0 = arith.constant 0 : i32
    return %arg0, %c0_i32 : i32, i32
  }
  func.func @transform_1(%arg0: i32) -> (i32, i32) {
    %c0_i32 = arith.constant 0 : i32
    %c0_i32_0 = arith.constant 0 : i32
    return %arg0, %c0_i32 : i32, i32
  }
  func.func @transform_2(%arg0: i32) -> (i32, i32) {
    %c0_i32 = arith.constant 0 : i32
    %c0_i32_0 = arith.constant 0 : i32
    %c0_i32_1 = arith.constant 0 : i32
    return %c0_i32, %c0_i32_0 : i32, i32
  }
  func.func @transform_3(%arg0: i32) -> (i32, i32) {
    %c0_i32 = arith.constant 0 : i32
    %c0_i32_0 = arith.constant 0 : i32
    %c0_i32_1 = arith.constant 0 : i32
    return %c0_i32, %c0_i32_0 : i32, i32
  }
  func.func @transform_4(%arg0: i32) -> (i32, i32) {
    %c0_i32 = arith.constant 0 : i32
    %c0_i32_0 = arith.constant 0 : i32
    %c0_i32_1 = arith.constant 0 : i32
    return %c0_i32, %c0_i32_0 : i32, i32
  }
  func.func @transform_5(%arg0: i32) -> (i32, i32) {
    %c0_i32 = arith.constant 0 : i32
    %c0_i32_0 = arith.constant 0 : i32
    %c0_i32_1 = arith.constant 0 : i32
    return %c0_i32, %c0_i32_0 : i32, i32
  }
  func.func @transform_6(%arg0: i32) -> (i32, i32) {
    %c0_i32 = arith.constant 0 : i32
    %c0_i32_0 = arith.constant 0 : i32
    %c0_i32_1 = arith.constant 0 : i32
    return %c0_i32, %c0_i32_0 : i32, i32
  }
  func.func @transform_7(%arg0: i32) -> (i32, i32) {
    %c0_i32 = arith.constant 0 : i32
    %c0_i32_0 = arith.constant 0 : i32
    %c0_i32_1 = arith.constant 0 : i32
    return %c0_i32, %c0_i32_0 : i32, i32
  }
  func.func @transform_8(%arg0: i32) -> (i32, i32) {
    %c0_i32 = arith.constant 0 : i32
    %c0_i32_0 = arith.constant 0 : i32
    %c0_i32_1 = arith.constant 0 : i32
    return %c0_i32, %c0_i32_0 : i32, i32
  }
  func.func @transform_9(%arg0: i32) -> (i32, i32) {
    %c0_i32 = arith.constant 0 : i32
    %c0_i32_0 = arith.constant 0 : i32
    %c0_i32_1 = arith.constant 0 : i32
    return %c0_i32, %c0_i32_0 : i32, i32
  }
  func.func @transform_10(%arg0: i32) -> (i32, i32) {
    %c0_i32 = arith.constant 0 : i32
    %c0_i32_0 = arith.constant 0 : i32
    %c0_i32_1 = arith.constant 0 : i32
    return %c0_i32, %c0_i32_0 : i32, i32
  }
  func.func @transform_11(%arg0: i32) -> (i32, i32) {
    %c0_i32 = arith.constant 0 : i32
    %c0_i32_0 = arith.constant 0 : i32
    %c0_i32_1 = arith.constant 0 : i32
    return %c0_i32, %c0_i32_0 : i32, i32
  }
  func.func @transform_12(%arg0: i32) -> (i32, i32) {
    %c0_i32 = arith.constant 0 : i32
    %c0_i32_0 = arith.constant 0 : i32
    %c0_i32_1 = arith.constant 0 : i32
    return %c0_i32, %c0_i32_0 : i32, i32
  }
  func.func @transform_13(%arg0: i32) -> (i32, i32) {
    %c0_i32 = arith.constant 0 : i32
    %c0_i32_0 = arith.constant 0 : i32
    %c0_i32_1 = arith.constant 0 : i32
    return %c0_i32, %c0_i32_0 : i32, i32
  }
  func.func @transform_14(%arg0: i32) -> (i32, i32) {
    %c0_i32 = arith.constant 0 : i32
    %c0_i32_0 = arith.constant 0 : i32
    %c0_i32_1 = arith.constant 0 : i32
    return %c0_i32, %c0_i32_0 : i32, i32
  }
  func.func @transform_15(%arg0: i32) -> (i32, i32) {
    %c0_i32 = arith.constant 0 : i32
    %c0_i32_0 = arith.constant 0 : i32
    %c0_i32_1 = arith.constant 0 : i32
    return %c0_i32, %c0_i32_0 : i32, i32
  }
  func.func @transform_16(%arg0: i32) -> (i32, i32) {
    %c0_i32 = arith.constant 0 : i32
    %c0_i32_0 = arith.constant 0 : i32
    return %arg0, %c0_i32 : i32, i32
  }
  func.func @transform_17(%arg0: i32) -> (i32, i32) {
    %c0_i32 = arith.constant 0 : i32
    %c0_i32_0 = arith.constant 0 : i32
    return %arg0, %c0_i32 : i32, i32
  }
  func.func @transform_18(%arg0: i32) -> (i32, i32) {
    %c0_i32 = arith.constant 0 : i32
    %c0_i32_0 = arith.constant 0 : i32
    return %arg0, %c0_i32 : i32, i32
  }
}

</mosaic_0001>

<llo_original>
// kernel: ae_forward.1
$region0: #{ae_forward.1}
  #allocation0 [shape = 'u32[]', space=smem, size = 0x4, offset = 0x4, fixed_abs, tag = 'smem constant byte address 0x4 - core index']
  #allocation1 [shape = 'u32[144,128]{1,0:T(1,128)}', space=vmem, size = 0x12000, scoped, tag = 'internal scratch']
  %s0 = inlined_call_operand.vmem [shape: f32[8,256], index: 0, kind: input, shape index: {}]
  %s1 = inlined_call_operand.vmem [shape: f32[8,16], index: 1, kind: input, shape index: {}]
  %s2 = inlined_call_operand.vmem [shape: bf16[256,512], index: 2, kind: input, shape index: {}]
  %s3 = inlined_call_operand.vmem [shape: f32[1,512], index: 3, kind: input, shape index: {}]
  %s4 = inlined_call_operand.vmem [shape: bf16[512,256], index: 4, kind: input, shape index: {}]
  %s5 = inlined_call_operand.vmem [shape: f32[1,256], index: 5, kind: input, shape index: {}]
  %s6 = inlined_call_operand.vmem [shape: bf16[256,16], index: 6, kind: input, shape index: {}]
  %s7 = inlined_call_operand.vmem [shape: f32[1,16], index: 7, kind: input, shape index: {}]
  %s8 = inlined_call_operand.vmem [shape: bf16[256,16], index: 8, kind: input, shape index: {}]
  %s9 = inlined_call_operand.vmem [shape: f32[1,16], index: 9, kind: input, shape index: {}]
  %s10 = inlined_call_operand.vmem [shape: bf16[16,256], index: 10, kind: input, shape index: {}]
  %s11 = inlined_call_operand.vmem [shape: f32[1,256], index: 11, kind: input, shape index: {}]
  %s12 = inlined_call_operand.vmem [shape: bf16[256,512], index: 12, kind: input, shape index: {}]
  %s13 = inlined_call_operand.vmem [shape: f32[1,512], index: 13, kind: input, shape index: {}]
  %s14 = inlined_call_operand.vmem [shape: bf16[512,256], index: 14, kind: input, shape index: {}]
  %s15 = inlined_call_operand.vmem [shape: f32[1,256], index: 15, kind: input, shape index: {}]
  %s16 = inlined_call_operand.vmem [shape: f32[8,256], index: 16, kind: output, shape index: {0}]
  %s17 = inlined_call_operand.vmem [shape: f32[8,16], index: 17, kind: output, shape index: {1}]
  %s18 = inlined_call_operand.vmem [shape: f32[8,16], index: 18, kind: output, shape index: {2}]
  %19 = xla_tuple %s16, %s17, %s18
  %s20 = sld [smem:[#allocation0]]
  $region90: #{ae_forward.1} parent=0
    _
  %s22 = ssub.s32 1, %s20
  %s23 = scalar_select 0, %s22, %s20
  // Predicated region
  $region2: #{ae_forward.1} parent=0 // pred_check
    _
  $region3: #{ae_forward.1} parent=0 // pred_check_branch
    %25 = sbr.rel (0) target = $region5
  $region4: #{ae_forward.1} parent=0 // pred_region
    _
  $region5: #{ae_forward.1} parent=0 // pred_fallthru
    _
  // Predicated region
  $region6: #{ae_forward.1} parent=0 // pred_check
    _
  $region7: #{ae_forward.1} parent=0 // pred_check_branch
    %27 = sbr.rel (0) target = $region9
  $region8: #{ae_forward.1} parent=0 // pred_region
    _
  $region9: #{ae_forward.1} parent=0 // pred_fallthru
    _
  // Predicated region
  $region10: #{ae_forward.1} parent=0 // pred_check
    _
  $region11: #{ae_forward.1} parent=0 // pred_check_branch
    %29 = sbr.rel (0) target = $region13
  $region12: #{ae_forward.1} parent=0 // pred_region
    _
  $region13: #{ae_forward.1} parent=0 // pred_fallthru
    _
  // Predicated region
  $region14: #{ae_forward.1} parent=0 // pred_check
    _
  $region15: #{ae_forward.1} parent=0 // pred_check_branch
    %31 = sbr.rel (0) target = $region17
  $region16: #{ae_forward.1} parent=0 // pred_region
    _
  $region17: #{ae_forward.1} parent=0 // pred_fallthru
    _
  // Predicated region
  $region18: #{ae_forward.1} parent=0 // pred_check
    _
  $region19: #{ae_forward.1} parent=0 // pred_check_branch
    %33 = sbr.rel (0) target = $region21
  $region20: #{ae_forward.1} parent=0 // pred_region
    _
  $region21: #{ae_forward.1} parent=0 // pred_fallthru
    _
  // Predicated region
  $region22: #{ae_forward.1} parent=0 // pred_check
    _
  $region23: #{ae_forward.1} parent=0 // pred_check_branch
    %35 = sbr.rel (0) target = $region25
  $region24: #{ae_forward.1} parent=0 // pred_region
    _
  $region25: #{ae_forward.1} parent=0 // pred_fallthru
    _
  // Predicated region
  $region26: #{ae_forward.1} parent=0 // pred_check
    _
  $region27: #{ae_forward.1} parent=0 // pred_check_branch
    %37 = sbr.rel (0) target = $region29
  $region28: #{ae_forward.1} parent=0 // pred_region
    _
  $region29: #{ae_forward.1} parent=0 // pred_fallthru
    _
  // Predicated region
  $region30: #{ae_forward.1} parent=0 // pred_check
    _
  $region31: #{ae_forward.1} parent=0 // pred_check_branch
    %39 = sbr.rel (0) target = $region33
  $region32: #{ae_forward.1} parent=0 // pred_region
    _
  $region33: #{ae_forward.1} parent=0 // pred_fallthru
    _
  // Predicated region
  $region34: #{ae_forward.1} parent=0 // pred_check
    _
  $region35: #{ae_forward.1} parent=0 // pred_check_branch
    %41 = sbr.rel (0) target = $region37
  $region36: #{ae_forward.1} parent=0 // pred_region
    _
  $region37: #{ae_forward.1} parent=0 // pred_fallthru
    _
  // Predicated region
  $region38: #{ae_forward.1} parent=0 // pred_check
    _
  $region39: #{ae_forward.1} parent=0 // pred_check_branch
    %43 = sbr.rel (0) target = $region41
  $region40: #{ae_forward.1} parent=0 // pred_region
    _
  $region41: #{ae_forward.1} parent=0 // pred_fallthru
    _
  // Predicated region
  $region42: #{ae_forward.1} parent=0 // pred_check
    _
  $region43: #{ae_forward.1} parent=0 // pred_check_branch
    %45 = sbr.rel (0) target = $region45
  $region44: #{ae_forward.1} parent=0 // pred_region
    _
  $region45: #{ae_forward.1} parent=0 // pred_fallthru
    _
  // Predicated region
  $region46: #{ae_forward.1} parent=0 // pred_check
    _
  $region47: #{ae_forward.1} parent=0 // pred_check_branch
    %47 = sbr.rel (0) target = $region49
  $region48: #{ae_forward.1} parent=0 // pred_region
    _
  $region49: #{ae_forward.1} parent=0 // pred_fallthru
    _
  // Predicated region
  $region50: #{ae_forward.1} parent=0 // pred_check
    _
  $region51: #{ae_forward.1} parent=0 // pred_check_branch
    %49 = sbr.rel (0) target = $region53
  $region52: #{ae_forward.1} parent=0 // pred_region
    _
  $region53: #{ae_forward.1} parent=0 // pred_fallthru
    _
  // Predicated region
  $region54: #{ae_forward.1} parent=0 // pred_check
    _
  $region55: #{ae_forward.1} parent=0 // pred_check_branch
    %51 = sbr.rel (0) target = $region57
  $region56: #{ae_forward.1} parent=0 // pred_region
    _
  $region57: #{ae_forward.1} parent=0 // pred_fallthru
    _
  // Predicated region
  $region58: #{ae_forward.1} parent=0 // pred_check
    _
  $region59: #{ae_forward.1} parent=0 // pred_check_branch
    %53 = sbr.rel (0) target = $region61
  $region60: #{ae_forward.1} parent=0 // pred_region
    _
  $region61: #{ae_forward.1} parent=0 // pred_fallthru
    _
  // Predicated region
  $region62: #{ae_forward.1} parent=0 // pred_check
    _
  $region63: #{ae_forward.1} parent=0 // pred_check_branch
    %55 = sbr.rel (0) target = $region65
  $region64: #{ae_forward.1} parent=0 // pred_region
    _
  $region65: #{ae_forward.1} parent=0 // pred_fallthru
    _
  %v57 = vld [vmem:[%s0] sm:$0xff]
  %v58 = vld [vmem:[%s0 + $0x8] sm:$0xff]
  %v59 = vpack.c.bf16 %v57, %v57
  %v60 = vpack.c.bf16 %v58, %v58
  %v61 = vld [vmem:[%s2] sm:$0xff]
  %v62 = vld [vmem:[%s2 + $0x8] sm:$0xff]
  %v63 = vld [vmem:[%s2 + $0x10] sm:$0xff]
  %v64 = vld [vmem:[%s2 + $0x18] sm:$0xff]
  %v65 = vld [vmem:[%s2 + $0x20] sm:$0xff]
  %v66 = vld [vmem:[%s2 + $0x28] sm:$0xff]
  %v67 = vld [vmem:[%s2 + $0x30] sm:$0xff]
  %v68 = vld [vmem:[%s2 + $0x38] sm:$0xff]
  %v69 = vld [vmem:[%s2 + $0x40] sm:$0xff]
  %v70 = vld [vmem:[%s2 + $0x48] sm:$0xff]
  %v71 = vld [vmem:[%s2 + $0x50] sm:$0xff]
  %v72 = vld [vmem:[%s2 + $0x58] sm:$0xff]
  %v73 = vld [vmem:[%s2 + $0x60] sm:$0xff]
  %v74 = vld [vmem:[%s2 + $0x68] sm:$0xff]
  %v75 = vld [vmem:[%s2 + $0x70] sm:$0xff]
  %v76 = vld [vmem:[%s2 + $0x78] sm:$0xff]
  %v77 = vld [vmem:[%s2 + $0x80] sm:$0xff]
  %v78 = vld [vmem:[%s2 + $0x88] sm:$0xff]
  %v79 = vld [vmem:[%s2 + $0x90] sm:$0xff]
  %v80 = vld [vmem:[%s2 + $0x98] sm:$0xff]
  %v81 = vld [vmem:[%s2 + $0xa0] sm:$0xff]
  %v82 = vld [vmem:[%s2 + $0xa8] sm:$0xff]
  %v83 = vld [vmem:[%s2 + $0xb0] sm:$0xff]
  %v84 = vld [vmem:[%s2 + $0xb8] sm:$0xff]
  %v85 = vld [vmem:[%s2 + $0xc0] sm:$0xff]
  %v86 = vld [vmem:[%s2 + $0xc8] sm:$0xff]
  %v87 = vld [vmem:[%s2 + $0xd0] sm:$0xff]
  %v88 = vld [vmem:[%s2 + $0xd8] sm:$0xff]
  %v89 = vld [vmem:[%s2 + $0xe0] sm:$0xff]
  %v90 = vld [vmem:[%s2 + $0xe8] sm:$0xff]
  %v91 = vld [vmem:[%s2 + $0xf0] sm:$0xff]
  %v92 = vld [vmem:[%s2 + $0xf8] sm:$0xff]
  %v93 = vld [vmem:[%s2 + $0x100] sm:$0xff]
  %v94 = vld [vmem:[%s2 + $0x108] sm:$0xff]
  %v95 = vld [vmem:[%s2 + $0x110] sm:$0xff]
  %v96 = vld [vmem:[%s2 + $0x118] sm:$0xff]
  %v97 = vld [vmem:[%s2 + $0x120] sm:$0xff]
  %v98 = vld [vmem:[%s2 + $0x128] sm:$0xff]
  %v99 = vld [vmem:[%s2 + $0x130] sm:$0xff]
  %v100 = vld [vmem:[%s2 + $0x138] sm:$0xff]
  %v101 = vld [vmem:[%s2 + $0x140] sm:$0xff]
  %v102 = vld [vmem:[%s2 + $0x148] sm:$0xff]
  %v103 = vld [vmem:[%s2 + $0x150] sm:$0xff]
  %v104 = vld [vmem:[%s2 + $0x158] sm:$0xff]
  %v105 = vld [vmem:[%s2 + $0x160] sm:$0xff]
  %v106 = vld [vmem:[%s2 + $0x168] sm:$0xff]
  %v107 = vld [vmem:[%s2 + $0x170] sm:$0xff]
  %v108 = vld [vmem:[%s2 + $0x178] sm:$0xff]
  %v109 = vld [vmem:[%s2 + $0x180] sm:$0xff]
  %v110 = vld [vmem:[%s2 + $0x188] sm:$0xff]
  %v111 = vld [vmem:[%s2 + $0x190] sm:$0xff]
  %v112 = vld [vmem:[%s2 + $0x198] sm:$0xff]
  %v113 = vld [vmem:[%s2 + $0x1a0] sm:$0xff]
  %v114 = vld [vmem:[%s2 + $0x1a8] sm:$0xff]
  %v115 = vld [vmem:[%s2 + $0x1b0] sm:$0xff]
  %v116 = vld [vmem:[%s2 + $0x1b8] sm:$0xff]
  %v117 = vld [vmem:[%s2 + $0x1c0] sm:$0xff]
  %v118 = vld [vmem:[%s2 + $0x1c8] sm:$0xff]
  %v119 = vld [vmem:[%s2 + $0x1d0] sm:$0xff]
  %v120 = vld [vmem:[%s2 + $0x1d8] sm:$0xff]
  %v121 = vld [vmem:[%s2 + $0x1e0] sm:$0xff]
  %v122 = vld [vmem:[%s2 + $0x1e8] sm:$0xff]
  %v123 = vld [vmem:[%s2 + $0x1f0] sm:$0xff]
  %v124 = vld [vmem:[%s2 + $0x1f8] sm:$0xff]
  %v125 = vld [vmem:[%s3] sm:$0xf]
  %v127 = vlaneseq
  %v128 = vshrl.u32 %v127, 7
  %v129 = vsub.s32 0, %v128
  %v130 = vrot.slane %v125, %v129
  %v131 = vlaneseq
  %v132 = vshrl.u32 %v131, 7
  %v133 = vsub.s32 1, %v132
  %v134 = vrot.slane %v125, %v133
  %v135 = vlaneseq
  %v136 = vshrl.u32 %v135, 7
  %v137 = vsub.s32 2, %v136
  %v138 = vrot.slane %v125, %v137
  %v139 = vlaneseq
  %v140 = vshrl.u32 %v139, 7
  %v141 = vsub.s32 3, %v140
  %v142 = vrot.slane %v125, %v141
  %v211 = vunpack.c.l.b16 %v61
  %v212 = vunpack.c.h.b16 %v61
  %v213 = vunpack.c.l.b16 %v62
  %v214 = vunpack.c.h.b16 %v62
  %v215 = vunpack.c.l.b16 %v63
  %v216 = vunpack.c.h.b16 %v63
  %v217 = vunpack.c.l.b16 %v64
  %v218 = vunpack.c.h.b16 %v64
  %v219 = vunpack.c.l.b16 %v65
  %v220 = vunpack.c.h.b16 %v65
  %v221 = vunpack.c.l.b16 %v66
  %v222 = vunpack.c.h.b16 %v66
  %v223 = vunpack.c.l.b16 %v67
  %v224 = vunpack.c.h.b16 %v67
  %v225 = vunpack.c.l.b16 %v68
  %v226 = vunpack.c.h.b16 %v68
  %v227 = vunpack.c.l.b16 %v69
  %v228 = vunpack.c.h.b16 %v69
  %v229 = vunpack.c.l.b16 %v70
  %v230 = vunpack.c.h.b16 %v70
  %v231 = vunpack.c.l.b16 %v71
  %v232 = vunpack.c.h.b16 %v71
  %v233 = vunpack.c.l.b16 %v72
  %v234 = vunpack.c.h.b16 %v72
  %v235 = vunpack.c.l.b16 %v73
  %v236 = vunpack.c.h.b16 %v73
  %v237 = vunpack.c.l.b16 %v74
  %v238 = vunpack.c.h.b16 %v74
  %v239 = vunpack.c.l.b16 %v75
  %v240 = vunpack.c.h.b16 %v75
  %v241 = vunpack.c.l.b16 %v76
  %v242 = vunpack.c.h.b16 %v76
  %v243 = vunpack.c.l.b16 %v77
  %v244 = vunpack.c.h.b16 %v77
  %v245 = vunpack.c.l.b16 %v78
  %v246 = vunpack.c.h.b16 %v78
  %v247 = vunpack.c.l.b16 %v79
  %v248 = vunpack.c.h.b16 %v79
  %v249 = vunpack.c.l.b16 %v80
  %v250 = vunpack.c.h.b16 %v80
  %v251 = vunpack.c.l.b16 %v81
  %v252 = vunpack.c.h.b16 %v81
  %v253 = vunpack.c.l.b16 %v82
  %v254 = vunpack.c.h.b16 %v82
  %v255 = vunpack.c.l.b16 %v83
  %v256 = vunpack.c.h.b16 %v83
  %v257 = vunpack.c.l.b16 %v84
  %v258 = vunpack.c.h.b16 %v84
  %v259 = vunpack.c.l.b16 %v85
  %v260 = vunpack.c.h.b16 %v85
  %v261 = vunpack.c.l.b16 %v86
  %v262 = vunpack.c.h.b16 %v86
  %v263 = vunpack.c.l.b16 %v87
  %v264 = vunpack.c.h.b16 %v87
  %v265 = vunpack.c.l.b16 %v88
  %v266 = vunpack.c.h.b16 %v88
  %v267 = vunpack.c.l.b16 %v89
  %v268 = vunpack.c.h.b16 %v89
  %v269 = vunpack.c.l.b16 %v90
  %v270 = vunpack.c.h.b16 %v90
  %v271 = vunpack.c.l.b16 %v91
  %v272 = vunpack.c.h.b16 %v91
  %v273 = vunpack.c.l.b16 %v92
  %v274 = vunpack.c.h.b16 %v92
  %v275 = vunpack.c.l.b16 %v93
  %v276 = vunpack.c.h.b16 %v93
  %v277 = vunpack.c.l.b16 %v94
  %v278 = vunpack.c.h.b16 %v94
  %v279 = vunpack.c.l.b16 %v95
  %v280 = vunpack.c.h.b16 %v95
  %v281 = vunpack.c.l.b16 %v96
  %v282 = vunpack.c.h.b16 %v96
  %v283 = vunpack.c.l.b16 %v97
  %v284 = vunpack.c.h.b16 %v97
  %v285 = vunpack.c.l.b16 %v98
  %v286 = vunpack.c.h.b16 %v98
  %v287 = vunpack.c.l.b16 %v99
  %v288 = vunpack.c.h.b16 %v99
  %v289 = vunpack.c.l.b16 %v100
  %v290 = vunpack.c.h.b16 %v100
  %v291 = vunpack.c.l.b16 %v101
  %v292 = vunpack.c.h.b16 %v101
  %v293 = vunpack.c.l.b16 %v102
  %v294 = vunpack.c.h.b16 %v102
  %v295 = vunpack.c.l.b16 %v103
  %v296 = vunpack.c.h.b16 %v103
  %v297 = vunpack.c.l.b16 %v104
  %v298 = vunpack.c.h.b16 %v104
  %v299 = vunpack.c.l.b16 %v105
  %v300 = vunpack.c.h.b16 %v105
  %v301 = vunpack.c.l.b16 %v106
  %v302 = vunpack.c.h.b16 %v106
  %v303 = vunpack.c.l.b16 %v107
  %v304 = vunpack.c.h.b16 %v107
  %v305 = vunpack.c.l.b16 %v108
  %v306 = vunpack.c.h.b16 %v108
  %v307 = vunpack.c.l.b16 %v109
  %v308 = vunpack.c.h.b16 %v109
  %v309 = vunpack.c.l.b16 %v110
  %v310 = vunpack.c.h.b16 %v110
  %v311 = vunpack.c.l.b16 %v111
  %v312 = vunpack.c.h.b16 %v111
  %v313 = vunpack.c.l.b16 %v112
  %v314 = vunpack.c.h.b16 %v112
  %v315 = vunpack.c.l.b16 %v113
  %v316 = vunpack.c.h.b16 %v113
  %v317 = vunpack.c.l.b16 %v114
  %v318 = vunpack.c.h.b16 %v114
  %v319 = vunpack.c.l.b16 %v115
  %v320 = vunpack.c.h.b16 %v115
  %v321 = vunpack.c.l.b16 %v116
  %v322 = vunpack.c.h.b16 %v116
  %v323 = vunpack.c.l.b16 %v117
  %v324 = vunpack.c.h.b16 %v117
  %v325 = vunpack.c.l.b16 %v118
  %v326 = vunpack.c.h.b16 %v118
  %v327 = vunpack.c.l.b16 %v119
  %v328 = vunpack.c.h.b16 %v119
  %v329 = vunpack.c.l.b16 %v120
  %v330 = vunpack.c.h.b16 %v120
  %v331 = vunpack.c.l.b16 %v121
  %v332 = vunpack.c.h.b16 %v121
  %v333 = vunpack.c.l.b16 %v122
  %v334 = vunpack.c.h.b16 %v122
  %v335 = vunpack.c.l.b16 %v123
  %v336 = vunpack.c.h.b16 %v123
  %v337 = vunpack.c.l.b16 %v124
  %v338 = vunpack.c.h.b16 %v124
  %v339 = vpack.c.b16 %v215, %v211
  %v340 = vpack.c.b16 %v216, %v212
  %v341 = vpack.c.b16 %v217, %v213
  %v342 = vpack.c.b16 %v218, %v214
  %v343 = vpack.c.b16 %v223, %v219
  %v344 = vpack.c.b16 %v224, %v220
  %v345 = vpack.c.b16 %v225, %v221
  %v346 = vpack.c.b16 %v226, %v222
  %v347 = vpack.c.b16 %v231, %v227
  %v348 = vpack.c.b16 %v232, %v228
  %v349 = vpack.c.b16 %v233, %v229
  %v350 = vpack.c.b16 %v234, %v230
  %v351 = vpack.c.b16 %v239, %v235
  %v352 = vpack.c.b16 %v240, %v236
  %v353 = vpack.c.b16 %v241, %v237
  %v354 = vpack.c.b16 %v242, %v238
  %v355 = vpack.c.b16 %v247, %v243
  %v356 = vpack.c.b16 %v248, %v244
  %v357 = vpack.c.b16 %v249, %v245
  %v358 = vpack.c.b16 %v250, %v246
  %v359 = vpack.c.b16 %v255, %v251
  %v360 = vpack.c.b16 %v256, %v252
  %v361 = vpack.c.b16 %v257, %v253
  %v362 = vpack.c.b16 %v258, %v254
  %v363 = vpack.c.b16 %v263, %v259
  %v364 = vpack.c.b16 %v264, %v260
  %v365 = vpack.c.b16 %v265, %v261
  %v366 = vpack.c.b16 %v266, %v262
  %v367 = vpack.c.b16 %v271, %v267
  %v368 = vpack.c.b16 %v272, %v268
  %v369 = vpack.c.b16 %v273, %v269
  %v370 = vpack.c.b16 %v274, %v270
  %v371 = vpack.c.b16 %v279, %v275
  %v372 = vpack.c.b16 %v280, %v276
  %v373 = vpack.c.b16 %v281, %v277
  %v374 = vpack.c.b16 %v282, %v278
  %v375 = vpack.c.b16 %v287, %v283
  %v376 = vpack.c.b16 %v288, %v284
  %v377 = vpack.c.b16 %v289, %v285
  %v378 = vpack.c.b16 %v290, %v286
  %v379 = vpack.c.b16 %v295, %v291
  %v380 = vpack.c.b16 %v296, %v292
  %v381 = vpack.c.b16 %v297, %v293
  %v382 = vpack.c.b16 %v298, %v294
  %v383 = vpack.c.b16 %v303, %v299
  %v384 = vpack.c.b16 %v304, %v300
  %v385 = vpack.c.b16 %v305, %v301
  %v386 = vpack.c.b16 %v306, %v302
  %v387 = vpack.c.b16 %v311, %v307
  %v388 = vpack.c.b16 %v312, %v308
  %v389 = vpack.c.b16 %v313, %v309
  %v390 = vpack.c.b16 %v314, %v310
  %v391 = vpack.c.b16 %v319, %v315
  %v392 = vpack.c.b16 %v320, %v316
  %v393 = vpack.c.b16 %v321, %v317
  %v394 = vpack.c.b16 %v322, %v318
  %v395 = vpack.c.b16 %v327, %v323
  %v396 = vpack.c.b16 %v328, %v324
  %v397 = vpack.c.b16 %v329, %v325
  %v398 = vpack.c.b16 %v330, %v326
  %v399 = vpack.c.b16 %v335, %v331
  %v400 = vpack.c.b16 %v336, %v332
  %v401 = vpack.c.b16 %v337, %v333
  %v402 = vpack.c.b16 %v338, %v334
  %467 = vmatprep.subr.bf16.mxu0 %v340
  %468 = vmatpush1.bf16.msra.mxu0 %v339
  %469 = vmatprep.subr.bf16.mxu0 %v344
  %470 = vmatpush1.bf16.msra.mxu0 %v343
  %471 = vmatprep.subr.bf16.mxu0 %v348
  %472 = vmatpush1.bf16.msra.mxu0 %v347
  %473 = vmatprep.subr.bf16.mxu0 %v352
  %474 = vmatpush1.bf16.msra.mxu0 %v351
  %475 = vmatprep.subr.bf16.mxu0 %v356
  %476 = vmatpush1.bf16.msra.mxu0 %v355
  %477 = vmatprep.subr.bf16.mxu0 %v360
  %478 = vmatpush1.bf16.msra.mxu0 %v359
  %479 = vmatprep.subr.bf16.mxu0 %v364
  %480 = vmatpush1.bf16.msra.mxu0 %v363
  %481 = vmatprep.subr.bf16.mxu0 %v368
  %482 = vmatpush1.bf16.msra.mxu0 %v367
  %483 = vmatprep.subr.bf16.mxu0 %v372
  %484 = vmatpush1.bf16.msra.mxu0 %v371
  %485 = vmatprep.subr.bf16.mxu0 %v376
  %486 = vmatpush1.bf16.msra.mxu0 %v375
  %487 = vmatprep.subr.bf16.mxu0 %v380
  %488 = vmatpush1.bf16.msra.mxu0 %v379
  %489 = vmatprep.subr.bf16.mxu0 %v384
  %490 = vmatpush1.bf16.msra.mxu0 %v383
  %491 = vmatprep.subr.bf16.mxu0 %v388
  %492 = vmatpush1.bf16.msra.mxu0 %v387
  %493 = vmatprep.subr.bf16.mxu0 %v392
  %494 = vmatpush1.bf16.msra.mxu0 %v391
  %495 = vmatprep.subr.bf16.mxu0 %v396
  %496 = vmatpush1.bf16.msra.mxu0 %v395
  %497 = vmatprep.subr.bf16.mxu0 %v400
  %498 = vmatpush1.bf16.msra.mxu0 %v399
  %499 = vmatprep.mubr.bf16.mxu0 %v60
  %500 = vmatmul.mubr.bf16.gmra.mrb[0].mxu0 %v59
  %v501 = vpop.f32.mrb[0].mxu0
  %v502 = vadd.f32 %v130, %v501
  %v503 = vpop.f32.mrb[0].mxu0
  %v504 = vadd.f32 %v134, %v503
  %v505 = vpop.f32.mrb[0].mxu0
  %v506 = vpop.f32.mrb[0].mxu0
  %507 = vdwg.mxu0
  %508 = vmatprep.subr.bf16.mxu0 %v342
  %509 = vmatpush1.bf16.msra.mxu0 %v341
  %510 = vmatprep.subr.bf16.mxu0 %v346
  %511 = vmatpush1.bf16.msra.mxu0 %v345
  %512 = vmatprep.subr.bf16.mxu0 %v350
  %513 = vmatpush1.bf16.msra.mxu0 %v349
  %514 = vmatprep.subr.bf16.mxu0 %v354
  %515 = vmatpush1.bf16.msra.mxu0 %v353
  %516 = vmatprep.subr.bf16.mxu0 %v358
  %517 = vmatpush1.bf16.msra.mxu0 %v357
  %518 = vmatprep.subr.bf16.mxu0 %v362
  %519 = vmatpush1.bf16.msra.mxu0 %v361
  %520 = vmatprep.subr.bf16.mxu0 %v366
  %521 = vmatpush1.bf16.msra.mxu0 %v365
  %522 = vmatprep.subr.bf16.mxu0 %v370
  %523 = vmatpush1.bf16.msra.mxu0 %v369
  %524 = vmatprep.subr.bf16.mxu0 %v374
  %525 = vmatpush1.bf16.msra.mxu0 %v373
  %526 = vmatprep.subr.bf16.mxu0 %v378
  %527 = vmatpush1.bf16.msra.mxu0 %v377
  %528 = vmatprep.subr.bf16.mxu0 %v382
  %529 = vmatpush1.bf16.msra.mxu0 %v381
  %530 = vmatprep.subr.bf16.mxu0 %v386
  %531 = vmatpush1.bf16.msra.mxu0 %v385
  %532 = vmatprep.subr.bf16.mxu0 %v390
  %533 = vmatpush1.bf16.msra.mxu0 %v389
  %534 = vmatprep.subr.bf16.mxu0 %v394
  %535 = vmatpush1.bf16.msra.mxu0 %v393
  %536 = vmatprep.subr.bf16.mxu0 %v398
  %537 = vmatpush1.bf16.msra.mxu0 %v397
  %538 = vmatprep.subr.bf16.mxu0 %v402
  %539 = vmatpush1.bf16.msra.mxu0 %v401
  %540 = vmatprep.mubr.bf16.mxu0 %v60
  %541 = vmatmul.mubr.bf16.gmra.mrb[0].mxu0 %v59
  %v542 = vpop.f32.mrb[0].mxu0
  %v543 = vadd.f32 %v138, %v542
  %v544 = vpop.f32.mrb[0].mxu0
  %v545 = vadd.f32 %v142, %v544
  %v546 = vpop.f32.mrb[0].mxu0
  %v547 = vpop.f32.mrb[0].mxu0
  %548 = vdwg.mxu0
  %v549 = vmax.f32 %v502, 0.0
  %v550 = vmax.f32 %v504, 0.0
  %v551 = vmax.f32 %v543, 0.0
  %v552 = vmax.f32 %v545, 0.0
  %v553 = vpack.c.bf16 %v549, %v549
  %v554 = vpack.c.bf16 %v550, %v550
  %v555 = vpack.c.bf16 %v551, %v551
  %v556 = vpack.c.bf16 %v552, %v552
  %v557 = vld [vmem:[%s4] sm:$0xff]
  %v558 = vld [vmem:[%s4 + $0x8] sm:$0xff]
  %v559 = vld [vmem:[%s4 + $0x10] sm:$0xff]
  %v560 = vld [vmem:[%s4 + $0x18] sm:$0xff]
  %v561 = vld [vmem:[%s4 + $0x20] sm:$0xff]
  %v562 = vld [vmem:[%s4 + $0x28] sm:$0xff]
  %v563 = vld [vmem:[%s4 + $0x30] sm:$0xff]
  %v564 = vld [vmem:[%s4 + $0x38] sm:$0xff]
  %v565 = vld [vmem:[%s4 + $0x40] sm:$0xff]
  %v566 = vld [vmem:[%s4 + $0x48] sm:$0xff]
  %v567 = vld [vmem:[%s4 + $0x50] sm:$0xff]
  %v568 = vld [vmem:[%s4 + $0x58] sm:$0xff]
  %v569 = vld [vmem:[%s4 + $0x60] sm:$0xff]
  %v570 = vld [vmem:[%s4 + $0x68] sm:$0xff]
  %v571 = vld [vmem:[%s4 + $0x70] sm:$0xff]
  %v572 = vld [vmem:[%s4 + $0x78] sm:$0xff]
  %v573 = vld [vmem:[%s4 + $0x80] sm:$0xff]
  %v574 = vld [vmem:[%s4 + $0x88] sm:$0xff]
  %v575 = vld [vmem:[%s4 + $0x90] sm:$0xff]
  %v576 = vld [vmem:[%s4 + $0x98] sm:$0xff]
  %v577 = vld [vmem:[%s4 + $0xa0] sm:$0xff]
  %v578 = vld [vmem:[%s4 + $0xa8] sm:$0xff]
  %v579 = vld [vmem:[%s4 + $0xb0] sm:$0xff]
  %v580 = vld [vmem:[%s4 + $0xb8] sm:$0xff]
  %v581 = vld [vmem:[%s4 + $0xc0] sm:$0xff]
  %v582 = vld [vmem:[%s4 + $0xc8] sm:$0xff]
  %v583 = vld [vmem:[%s4 + $0xd0] sm:$0xff]
  %v584 = vld [vmem:[%s4 + $0xd8] sm:$0xff]
  %v585 = vld [vmem:[%s4 + $0xe0] sm:$0xff]
  %v586 = vld [vmem:[%s4 + $0xe8] sm:$0xff]
  %v587 = vld [vmem:[%s4 + $0xf0] sm:$0xff]
  %v588 = vld [vmem:[%s4 + $0xf8] sm:$0xff]
  %v589 = vld [vmem:[%s4 + $0x100] sm:$0xff]
  %v590 = vld [vmem:[%s4 + $0x108] sm:$0xff]
  %v591 = vld [vmem:[%s4 + $0x110] sm:$0xff]
  %v592 = vld [vmem:[%s4 + $0x118] sm:$0xff]
  %v593 = vld [vmem:[%s4 + $0x120] sm:$0xff]
  %v594 = vld [vmem:[%s4 + $0x128] sm:$0xff]
  %v595 = vld [vmem:[%s4 + $0x130] sm:$0xff]
  %v596 = vld [vmem:[%s4 + $0x138] sm:$0xff]
  %v597 = vld [vmem:[%s4 + $0x140] sm:$0xff]
  %v598 = vld [vmem:[%s4 + $0x148] sm:$0xff]
  %v599 = vld [vmem:[%s4 + $0x150] sm:$0xff]
  %v600 = vld [vmem:[%s4 + $0x158] sm:$0xff]
  %v601 = vld [vmem:[%s4 + $0x160] sm:$0xff]
  %v602 = vld [vmem:[%s4 + $0x168] sm:$0xff]
  %v603 = vld [vmem:[%s4 + $0x170] sm:$0xff]
  %v604 = vld [vmem:[%s4 + $0x178] sm:$0xff]
  %v605 = vld [vmem:[%s4 + $0x180] sm:$0xff]
  %v606 = vld [vmem:[%s4 + $0x188] sm:$0xff]
  %v607 = vld [vmem:[%s4 + $0x190] sm:$0xff]
  %v608 = vld [vmem:[%s4 + $0x198] sm:$0xff]
  %v609 = vld [vmem:[%s4 + $0x1a0] sm:$0xff]
  %v610 = vld [vmem:[%s4 + $0x1a8] sm:$0xff]
  %v611 = vld [vmem:[%s4 + $0x1b0] sm:$0xff]
  %v612 = vld [vmem:[%s4 + $0x1b8] sm:$0xff]
  %v613 = vld [vmem:[%s4 + $0x1c0] sm:$0xff]
  %v614 = vld [vmem:[%s4 + $0x1c8] sm:$0xff]
  %v615 = vld [vmem:[%s4 + $0x1d0] sm:$0xff]
  %v616 = vld [vmem:[%s4 + $0x1d8] sm:$0xff]
  %v617 = vld [vmem:[%s4 + $0x1e0] sm:$0xff]
  %v618 = vld [vmem:[%s4 + $0x1e8] sm:$0xff]
  %v619 = vld [vmem:[%s4 + $0x1f0] sm:$0xff]
  %v620 = vld [vmem:[%s4 + $0x1f8] sm:$0xff]
  %v621 = vld [vmem:[%s5] sm:$0x3]
  %v623 = vlaneseq
  %v624 = vshrl.u32 %v623, 7
  %v625 = vsub.s32 0, %v624
  %v626 = vrot.slane %v621, %v625
  %v627 = vlaneseq
  %v628 = vshrl.u32 %v627, 7
  %v629 = vsub.s32 1, %v628
  %v630 = vrot.slane %v621, %v629
  %v697 = vunpack.c.l.b16 %v557
  %v698 = vunpack.c.h.b16 %v557
  %v699 = vunpack.c.l.b16 %v558
  %v700 = vunpack.c.h.b16 %v558
  %v701 = vunpack.c.l.b16 %v559
  %v702 = vunpack.c.h.b16 %v559
  %v703 = vunpack.c.l.b16 %v560
  %v704 = vunpack.c.h.b16 %v560
  %v705 = vunpack.c.l.b16 %v561
  %v706 = vunpack.c.h.b16 %v561
  %v707 = vunpack.c.l.b16 %v562
  %v708 = vunpack.c.h.b16 %v562
  %v709 = vunpack.c.l.b16 %v563
  %v710 = vunpack.c.h.b16 %v563
  %v711 = vunpack.c.l.b16 %v564
  %v712 = vunpack.c.h.b16 %v564
  %v713 = vunpack.c.l.b16 %v565
  %v714 = vunpack.c.h.b16 %v565
  %v715 = vunpack.c.l.b16 %v566
  %v716 = vunpack.c.h.b16 %v566
  %v717 = vunpack.c.l.b16 %v567
  %v718 = vunpack.c.h.b16 %v567
  %v719 = vunpack.c.l.b16 %v568
  %v720 = vunpack.c.h.b16 %v568
  %v721 = vunpack.c.l.b16 %v569
  %v722 = vunpack.c.h.b16 %v569
  %v723 = vunpack.c.l.b16 %v570
  %v724 = vunpack.c.h.b16 %v570
  %v725 = vunpack.c.l.b16 %v571
  %v726 = vunpack.c.h.b16 %v571
  %v727 = vunpack.c.l.b16 %v572
  %v728 = vunpack.c.h.b16 %v572
  %v729 = vunpack.c.l.b16 %v573
  %v730 = vunpack.c.h.b16 %v573
  %v731 = vunpack.c.l.b16 %v574
  %v732 = vunpack.c.h.b16 %v574
  %v733 = vunpack.c.l.b16 %v575
  %v734 = vunpack.c.h.b16 %v575
  %v735 = vunpack.c.l.b16 %v576
  %v736 = vunpack.c.h.b16 %v576
  %v737 = vunpack.c.l.b16 %v577
  %v738 = vunpack.c.h.b16 %v577
  %v739 = vunpack.c.l.b16 %v578
  %v740 = vunpack.c.h.b16 %v578
  %v741 = vunpack.c.l.b16 %v579
  %v742 = vunpack.c.h.b16 %v579
  %v743 = vunpack.c.l.b16 %v580
  %v744 = vunpack.c.h.b16 %v580
  %v745 = vunpack.c.l.b16 %v581
  %v746 = vunpack.c.h.b16 %v581
  %v747 = vunpack.c.l.b16 %v582
  %v748 = vunpack.c.h.b16 %v582
  %v749 = vunpack.c.l.b16 %v583
  %v750 = vunpack.c.h.b16 %v583
  %v751 = vunpack.c.l.b16 %v584
  %v752 = vunpack.c.h.b16 %v584
  %v753 = vunpack.c.l.b16 %v585
  %v754 = vunpack.c.h.b16 %v585
  %v755 = vunpack.c.l.b16 %v586
  %v756 = vunpack.c.h.b16 %v586
  %v757 = vunpack.c.l.b16 %v587
  %v758 = vunpack.c.h.b16 %v587
  %v759 = vunpack.c.l.b16 %v588
  %v760 = vunpack.c.h.b16 %v588
  %v761 = vunpack.c.l.b16 %v589
  %v762 = vunpack.c.h.b16 %v589
  %v763 = vunpack.c.l.b16 %v590
  %v764 = vunpack.c.h.b16 %v590
  %v765 = vunpack.c.l.b16 %v591
  %v766 = vunpack.c.h.b16 %v591
  %v767 = vunpack.c.l.b16 %v592
  %v768 = vunpack.c.h.b16 %v592
  %v769 = vunpack.c.l.b16 %v593
  %v770 = vunpack.c.h.b16 %v593
  %v771 = vunpack.c.l.b16 %v594
  %v772 = vunpack.c.h.b16 %v594
  %v773 = vunpack.c.l.b16 %v595
  %v774 = vunpack.c.h.b16 %v595
  %v775 = vunpack.c.l.b16 %v596
  %v776 = vunpack.c.h.b16 %v596
  %v777 = vunpack.c.l.b16 %v597
  %v778 = vunpack.c.h.b16 %v597
  %v779 = vunpack.c.l.b16 %v598
  %v780 = vunpack.c.h.b16 %v598
  %v781 = vunpack.c.l.b16 %v599
  %v782 = vunpack.c.h.b16 %v599
  %v783 = vunpack.c.l.b16 %v600
  %v784 = vunpack.c.h.b16 %v600
  %v785 = vunpack.c.l.b16 %v601
  %v786 = vunpack.c.h.b16 %v601
  %v787 = vunpack.c.l.b16 %v602
  %v788 = vunpack.c.h.b16 %v602
  %v789 = vunpack.c.l.b16 %v603
  %v790 = vunpack.c.h.b16 %v603
  %v791 = vunpack.c.l.b16 %v604
  %v792 = vunpack.c.h.b16 %v604
  %v793 = vunpack.c.l.b16 %v605
  %v794 = vunpack.c.h.b16 %v605
  %v795 = vunpack.c.l.b16 %v606
  %v796 = vunpack.c.h.b16 %v606
  %v797 = vunpack.c.l.b16 %v607
  %v798 = vunpack.c.h.b16 %v607
  %v799 = vunpack.c.l.b16 %v608
  %v800 = vunpack.c.h.b16 %v608
  %v801 = vunpack.c.l.b16 %v609
  %v802 = vunpack.c.h.b16 %v609
  %v803 = vunpack.c.l.b16 %v610
  %v804 = vunpack.c.h.b16 %v610
  %v805 = vunpack.c.l.b16 %v611
  %v806 = vunpack.c.h.b16 %v611
  %v807 = vunpack.c.l.b16 %v612
  %v808 = vunpack.c.h.b16 %v612
  %v809 = vunpack.c.l.b16 %v613
  %v810 = vunpack.c.h.b16 %v613
  %v811 = vunpack.c.l.b16 %v614
  %v812 = vunpack.c.h.b16 %v614
  %v813 = vunpack.c.l.b16 %v615
  %v814 = vunpack.c.h.b16 %v615
  %v815 = vunpack.c.l.b16 %v616
  %v816 = vunpack.c.h.b16 %v616
  %v817 = vunpack.c.l.b16 %v617
  %v818 = vunpack.c.h.b16 %v617
  %v819 = vunpack.c.l.b16 %v618
  %v820 = vunpack.c.h.b16 %v618
  %v821 = vunpack.c.l.b16 %v619
  %v822 = vunpack.c.h.b16 %v619
  %v823 = vunpack.c.l.b16 %v620
  %v824 = vunpack.c.h.b16 %v620
  %v825 = vpack.c.b16 %v699, %v697
  %v826 = vpack.c.b16 %v700, %v698
  %v827 = vpack.c.b16 %v703, %v701
  %v828 = vpack.c.b16 %v704, %v702
  %v829 = vpack.c.b16 %v707, %v705
  %v830 = vpack.c.b16 %v708, %v706
  %v831 = vpack.c.b16 %v711, %v709
  %v832 = vpack.c.b16 %v712, %v710
  %v833 = vpack.c.b16 %v715, %v713
  %v834 = vpack.c.b16 %v716, %v714
  %v835 = vpack.c.b16 %v719, %v717
  %v836 = vpack.c.b16 %v720, %v718
  %v837 = vpack.c.b16 %v723, %v721
  %v838 = vpack.c.b16 %v724, %v722
  %v839 = vpack.c.b16 %v727, %v725
  %v840 = vpack.c.b16 %v728, %v726
  %v841 = vpack.c.b16 %v731, %v729
  %v842 = vpack.c.b16 %v732, %v730
  %v843 = vpack.c.b16 %v735, %v733
  %v844 = vpack.c.b16 %v736, %v734
  %v845 = vpack.c.b16 %v739, %v737
  %v846 = vpack.c.b16 %v740, %v738
  %v847 = vpack.c.b16 %v743, %v741
  %v848 = vpack.c.b16 %v744, %v742
  %v849 = vpack.c.b16 %v747, %v745
  %v850 = vpack.c.b16 %v748, %v746
  %v851 = vpack.c.b16 %v751, %v749
  %v852 = vpack.c.b16 %v752, %v750
  %v853 = vpack.c.b16 %v755, %v753
  %v854 = vpack.c.b16 %v756, %v754
  %v855 = vpack.c.b16 %v759, %v757
  %v856 = vpack.c.b16 %v760, %v758
  %v857 = vpack.c.b16 %v763, %v761
  %v858 = vpack.c.b16 %v764, %v762
  %v859 = vpack.c.b16 %v767, %v765
  %v860 = vpack.c.b16 %v768, %v766
  %v861 = vpack.c.b16 %v771, %v769
  %v862 = vpack.c.b16 %v772, %v770
  %v863 = vpack.c.b16 %v775, %v773
  %v864 = vpack.c.b16 %v776, %v774
  %v865 = vpack.c.b16 %v779, %v777
  %v866 = vpack.c.b16 %v780, %v778
  %v867 = vpack.c.b16 %v783, %v781
  %v868 = vpack.c.b16 %v784, %v782
  %v869 = vpack.c.b16 %v787, %v785
  %v870 = vpack.c.b16 %v788, %v786
  %v871 = vpack.c.b16 %v791, %v789
  %v872 = vpack.c.b16 %v792, %v790
  %v873 = vpack.c.b16 %v795, %v793
  %v874 = vpack.c.b16 %v796, %v794
  %v875 = vpack.c.b16 %v799, %v797
  %v876 = vpack.c.b16 %v800, %v798
  %v877 = vpack.c.b16 %v803, %v801
  %v878 = vpack.c.b16 %v804, %v802
  %v879 = vpack.c.b16 %v807, %v805
  %v880 = vpack.c.b16 %v808, %v806
  %v881 = vpack.c.b16 %v811, %v809
  %v882 = vpack.c.b16 %v812, %v810
  %v883 = vpack.c.b16 %v815, %v813
  %v884 = vpack.c.b16 %v816, %v814
  %v885 = vpack.c.b16 %v819, %v817
  %v886 = vpack.c.b16 %v820, %v818
  %v887 = vpack.c.b16 %v823, %v821
  %v888 = vpack.c.b16 %v824, %v822
  %953 = vmatprep.subr.bf16.mxu0 %v826
  %954 = vmatpush1.bf16.msra.mxu0 %v825
  %955 = vmatprep.subr.bf16.mxu0 %v828
  %956 = vmatpush1.bf16.msra.mxu0 %v827
  %957 = vmatprep.subr.bf16.mxu0 %v830
  %958 = vmatpush1.bf16.msra.mxu0 %v829
  %959 = vmatprep.subr.bf16.mxu0 %v832
  %960 = vmatpush1.bf16.msra.mxu0 %v831
  %961 = vmatprep.subr.bf16.mxu0 %v834
  %962 = vmatpush1.bf16.msra.mxu0 %v833
  %963 = vmatprep.subr.bf16.mxu0 %v836
  %964 = vmatpush1.bf16.msra.mxu0 %v835
  %965 = vmatprep.subr.bf16.mxu0 %v838
  %966 = vmatpush1.bf16.msra.mxu0 %v837
  %967 = vmatprep.subr.bf16.mxu0 %v840
  %968 = vmatpush1.bf16.msra.mxu0 %v839
  %969 = vmatprep.subr.bf16.mxu0 %v842
  %970 = vmatpush1.bf16.msra.mxu0 %v841
  %971 = vmatprep.subr.bf16.mxu0 %v844
  %972 = vmatpush1.bf16.msra.mxu0 %v843
  %973 = vmatprep.subr.bf16.mxu0 %v846
  %974 = vmatpush1.bf16.msra.mxu0 %v845
  %975 = vmatprep.subr.bf16.mxu0 %v848
  %976 = vmatpush1.bf16.msra.mxu0 %v847
  %977 = vmatprep.subr.bf16.mxu0 %v850
  %978 = vmatpush1.bf16.msra.mxu0 %v849
  %979 = vmatprep.subr.bf16.mxu0 %v852
  %980 = vmatpush1.bf16.msra.mxu0 %v851
  %981 = vmatprep.subr.bf16.mxu0 %v854
  %982 = vmatpush1.bf16.msra.mxu0 %v853
  %983 = vmatprep.subr.bf16.mxu0 %v856
  %984 = vmatpush1.bf16.msra.mxu0 %v855
  %985 = vmatprep.mubr.bf16.mxu0 %v554
  %986 = vmatmul.mubr.bf16.gmra.mrb[0].mxu0 %v553
  %v987 = vpop.f32.mrb[0].mxu0
  %v988 = vadd.f32 %v626, %v987
  %v989 = vpop.f32.mrb[0].mxu0
  %v990 = vadd.f32 %v630, %v989
  %v991 = vpop.f32.mrb[0].mxu0
  %v992 = vpop.f32.mrb[0].mxu0
  %993 = vdwg.mxu0
  %994 = vmatprep.subr.bf16.mxu0 %v858
  %995 = vmatpush1.bf16.msra.mxu0 %v857
  %996 = vmatprep.subr.bf16.mxu0 %v860
  %997 = vmatpush1.bf16.msra.mxu0 %v859
  %998 = vmatprep.subr.bf16.mxu0 %v862
  %999 = vmatpush1.bf16.msra.mxu0 %v861
  %1000 = vmatprep.subr.bf16.mxu0 %v864
  %1001 = vmatpush1.bf16.msra.mxu0 %v863
  %1002 = vmatprep.subr.bf16.mxu0 %v866
  %1003 = vmatpush1.bf16.msra.mxu0 %v865
  %1004 = vmatprep.subr.bf16.mxu0 %v868
  %1005 = vmatpush1.bf16.msra.mxu0 %v867
  %1006 = vmatprep.subr.bf16.mxu0 %v870
  %1007 = vmatpush1.bf16.msra.mxu0 %v869
  %1008 = vmatprep.subr.bf16.mxu0 %v872
  %1009 = vmatpush1.bf16.msra.mxu0 %v871
  %1010 = vmatprep.subr.bf16.mxu0 %v874
  %1011 = vmatpush1.bf16.msra.mxu0 %v873
  %1012 = vmatprep.subr.bf16.mxu0 %v876
  %1013 = vmatpush1.bf16.msra.mxu0 %v875
  %1014 = vmatprep.subr.bf16.mxu0 %v878
  %1015 = vmatpush1.bf16.msra.mxu0 %v877
  %1016 = vmatprep.subr.bf16.mxu0 %v880
  %1017 = vmatpush1.bf16.msra.mxu0 %v879
  %1018 = vmatprep.subr.bf16.mxu0 %v882
  %1019 = vmatpush1.bf16.msra.mxu0 %v881
  %1020 = vmatprep.subr.bf16.mxu0 %v884
  %1021 = vmatpush1.bf16.msra.mxu0 %v883
  %1022 = vmatprep.subr.bf16.mxu0 %v886
  %1023 = vmatpush1.bf16.msra.mxu0 %v885
  %1024 = vmatprep.subr.bf16.mxu0 %v888
  %1025 = vmatpush1.bf16.msra.mxu0 %v887
  %1026 = vmatprep.mubr.bf16.mxu0 %v556
  %1027 = vmatmul.mubr.bf16.gmra.mrb[0].mxu0 %v555
  %v1028 = vpop.f32.mrb[0].mxu0
  %v1029 = vadd.f32 %v988, %v1028
  %v1030 = vpop.f32.mrb[0].mxu0
  %v1031 = vadd.f32 %v990, %v1030
  %v1032 = vpop.f32.mrb[0].mxu0
  %v1033 = vpop.f32.mrb[0].mxu0
  %1034 = vdwg.mxu0
  %v1035 = vmax.f32 %v1029, 0.0
  %v1036 = vmax.f32 %v1031, 0.0
  %v1037 = vpack.c.bf16 %v1035, %v1035
  %v1038 = vpack.c.bf16 %v1036, %v1036
  %v1039 = vld [vmem:[%s6] sm:$0xf]
  %v1040 = vld [vmem:[%s6 + $0x4] sm:$0xf]
  %v1041 = vld [vmem:[%s6 + $0x8] sm:$0xf]
  %v1042 = vld [vmem:[%s6 + $0xc] sm:$0xf]
  %v1043 = vld [vmem:[%s6 + $0x10] sm:$0xf]
  %v1044 = vld [vmem:[%s6 + $0x14] sm:$0xf]
  %v1045 = vld [vmem:[%s6 + $0x18] sm:$0xf]
  %v1046 = vld [vmem:[%s6 + $0x1c] sm:$0xf]
  %v1047 = vld [vmem:[%s6 + $0x20] sm:$0xf]
  %v1048 = vld [vmem:[%s6 + $0x24] sm:$0xf]
  %v1049 = vld [vmem:[%s6 + $0x28] sm:$0xf]
  %v1050 = vld [vmem:[%s6 + $0x2c] sm:$0xf]
  %v1051 = vld [vmem:[%s6 + $0x30] sm:$0xf]
  %v1052 = vld [vmem:[%s6 + $0x34] sm:$0xf]
  %v1053 = vld [vmem:[%s6 + $0x38] sm:$0xf]
  %v1054 = vld [vmem:[%s6 + $0x3c] sm:$0xf]
  %v1055 = vld [vmem:[%s6 + $0x40] sm:$0xf]
  %v1056 = vld [vmem:[%s6 + $0x44] sm:$0xf]
  %v1057 = vld [vmem:[%s6 + $0x48] sm:$0xf]
  %v1058 = vld [vmem:[%s6 + $0x4c] sm:$0xf]
  %v1059 = vld [vmem:[%s6 + $0x50] sm:$0xf]
  %v1060 = vld [vmem:[%s6 + $0x54] sm:$0xf]
  %v1061 = vld [vmem:[%s6 + $0x58] sm:$0xf]
  %v1062 = vld [vmem:[%s6 + $0x5c] sm:$0xf]
  %v1063 = vld [vmem:[%s6 + $0x60] sm:$0xf]
  %v1064 = vld [vmem:[%s6 + $0x64] sm:$0xf]
  %v1065 = vld [vmem:[%s6 + $0x68] sm:$0xf]
  %v1066 = vld [vmem:[%s6 + $0x6c] sm:$0xf]
  %v1067 = vld [vmem:[%s6 + $0x70] sm:$0xf]
  %v1068 = vld [vmem:[%s6 + $0x74] sm:$0xf]
  %v1069 = vld [vmem:[%s6 + $0x78] sm:$0xf]
  %v1070 = vld [vmem:[%s6 + $0x7c] sm:$0xf]
  %v1071 = vld [vmem:[%s7] sm:$0x1]
  %v1073 = vlaneseq
  %v1074 = vshrl.u32 %v1073, 7
  %v1075 = vsub.s32 0, %v1074
  %v1076 = vrot.slane %v1071, %v1075
  %v1110 = vunpack.c.l.b16 %v1039
  %v1111 = vunpack.c.l.b16 %v1040
  %v1112 = vunpack.c.l.b16 %v1041
  %v1113 = vunpack.c.l.b16 %v1042
  %v1114 = vunpack.c.l.b16 %v1043
  %v1115 = vunpack.c.l.b16 %v1044
  %v1116 = vunpack.c.l.b16 %v1045
  %v1117 = vunpack.c.l.b16 %v1046
  %v1118 = vunpack.c.l.b16 %v1047
  %v1119 = vunpack.c.l.b16 %v1048
  %v1120 = vunpack.c.l.b16 %v1049
  %v1121 = vunpack.c.l.b16 %v1050
  %v1122 = vunpack.c.l.b16 %v1051
  %v1123 = vunpack.c.l.b16 %v1052
  %v1124 = vunpack.c.l.b16 %v1053
  %v1125 = vunpack.c.l.b16 %v1054
  %v1126 = vunpack.c.l.b16 %v1055
  %v1127 = vunpack.c.l.b16 %v1056
  %v1128 = vunpack.c.l.b16 %v1057
  %v1129 = vunpack.c.l.b16 %v1058
  %v1130 = vunpack.c.l.b16 %v1059
  %v1131 = vunpack.c.l.b16 %v1060
  %v1132 = vunpack.c.l.b16 %v1061
  %v1133 = vunpack.c.l.b16 %v1062
  %v1134 = vunpack.c.l.b16 %v1063
  %v1135 = vunpack.c.l.b16 %v1064
  %v1136 = vunpack.c.l.b16 %v1065
  %v1137 = vunpack.c.l.b16 %v1066
  %v1138 = vunpack.c.l.b16 %v1067
  %v1139 = vunpack.c.l.b16 %v1068
  %v1140 = vunpack.c.l.b16 %v1069
  %v1141 = vunpack.c.l.b16 %v1070
  %v1142 = vpack.c.b16 %v1111, %v1110
  %v1143 = vpack.c.b16 %v1113, %v1112
  %v1144 = vpack.c.b16 %v1115, %v1114
  %v1145 = vpack.c.b16 %v1117, %v1116
  %v1146 = vpack.c.b16 %v1119, %v1118
  %v1147 = vpack.c.b16 %v1121, %v1120
  %v1148 = vpack.c.b16 %v1123, %v1122
  %v1149 = vpack.c.b16 %v1125, %v1124
  %v1150 = vpack.c.b16 %v1127, %v1126
  %v1151 = vpack.c.b16 %v1129, %v1128
  %v1152 = vpack.c.b16 %v1131, %v1130
  %v1153 = vpack.c.b16 %v1133, %v1132
  %v1154 = vpack.c.b16 %v1135, %v1134
  %v1155 = vpack.c.b16 %v1137, %v1136
  %v1156 = vpack.c.b16 %v1139, %v1138
  %v1157 = vpack.c.b16 %v1141, %v1140
  %1174 = vmatprep.subr.bf16.mxu0 0
  %1175 = vmatpush1.bf16.msra.mxu0 %v1142
  %1176 = vmatprep.subr.bf16.mxu0 0
  %1177 = vmatpush1.bf16.msra.mxu0 %v1143
  %1178 = vmatprep.subr.bf16.mxu0 0
  %1179 = vmatpush1.bf16.msra.mxu0 %v1144
  %1180 = vmatprep.subr.bf16.mxu0 0
  %1181 = vmatpush1.bf16.msra.mxu0 %v1145
  %1182 = vmatprep.subr.bf16.mxu0 0
  %1183 = vmatpush1.bf16.msra.mxu0 %v1146
  %1184 = vmatprep.subr.bf16.mxu0 0
  %1185 = vmatpush1.bf16.msra.mxu0 %v1147
  %1186 = vmatprep.subr.bf16.mxu0 0
  %1187 = vmatpush1.bf16.msra.mxu0 %v1148
  %1188 = vmatprep.subr.bf16.mxu0 0
  %1189 = vmatpush1.bf16.msra.mxu0 %v1149
  %1190 = vmatprep.subr.bf16.mxu0 0
  %1191 = vmatpush1.bf16.msra.mxu0 %v1150
  %1192 = vmatprep.subr.bf16.mxu0 0
  %1193 = vmatpush1.bf16.msra.mxu0 %v1151
  %1194 = vmatprep.subr.bf16.mxu0 0
  %1195 = vmatpush1.bf16.msra.mxu0 %v1152
  %1196 = vmatprep.subr.bf16.mxu0 0
  %1197 = vmatpush1.bf16.msra.mxu0 %v1153
  %1198 = vmatprep.subr.bf16.mxu0 0
  %1199 = vmatpush1.bf16.msra.mxu0 %v1154
  %1200 = vmatprep.subr.bf16.mxu0 0
  %1201 = vmatpush1.bf16.msra.mxu0 %v1155
  %1202 = vmatprep.subr.bf16.mxu0 0
  %1203 = vmatpush1.bf16.msra.mxu0 %v1156
  %1204 = vmatprep.subr.bf16.mxu0 0
  %1205 = vmatpush1.bf16.msra.mxu0 %v1157
  %1206 = vmatprep.mubr.bf16.mxu0 %v1038
  %1207 = vmatmul.mubr.bf16.gmra.mrb[0].mxu0 %v1037
  %v1208 = vpop.f32.mrb[0].mxu0
  %v1209 = vadd.f32 %v1076, %v1208
  %v1210 = vpop.f32.mrb[0].mxu0
  %v1211 = vpop.f32.mrb[0].mxu0
  %v1212 = vpop.f32.mrb[0].mxu0
  %1213 = vdwg.mxu0
  %v1214 = vld [vmem:[%s8] sm:$0xf]
  %v1215 = vld [vmem:[%s8 + $0x4] sm:$0xf]
  %v1216 = vld [vmem:[%s8 + $0x8] sm:$0xf]
  %v1217 = vld [vmem:[%s8 + $0xc] sm:$0xf]
  %v1218 = vld [vmem:[%s8 + $0x10] sm:$0xf]
  %v1219 = vld [vmem:[%s8 + $0x14] sm:$0xf]
  %v1220 = vld [vmem:[%s8 + $0x18] sm:$0xf]
  %v1221 = vld [vmem:[%s8 + $0x1c] sm:$0xf]
  %v1222 = vld [vmem:[%s8 + $0x20] sm:$0xf]
  %v1223 = vld [vmem:[%s8 + $0x24] sm:$0xf]
  %v1224 = vld [vmem:[%s8 + $0x28] sm:$0xf]
  %v1225 = vld [vmem:[%s8 + $0x2c] sm:$0xf]
  %v1226 = vld [vmem:[%s8 + $0x30] sm:$0xf]
  %v1227 = vld [vmem:[%s8 + $0x34] sm:$0xf]
  %v1228 = vld [vmem:[%s8 + $0x38] sm:$0xf]
  %v1229 = vld [vmem:[%s8 + $0x3c] sm:$0xf]
  %v1230 = vld [vmem:[%s8 + $0x40] sm:$0xf]
  %v1231 = vld [vmem:[%s8 + $0x44] sm:$0xf]
  %v1232 = vld [vmem:[%s8 + $0x48] sm:$0xf]
  %v1233 = vld [vmem:[%s8 + $0x4c] sm:$0xf]
  %v1234 = vld [vmem:[%s8 + $0x50] sm:$0xf]
  %v1235 = vld [vmem:[%s8 + $0x54] sm:$0xf]
  %v1236 = vld [vmem:[%s8 + $0x58] sm:$0xf]
  %v1237 = vld [vmem:[%s8 + $0x5c] sm:$0xf]
  %v1238 = vld [vmem:[%s8 + $0x60] sm:$0xf]
  %v1239 = vld [vmem:[%s8 + $0x64] sm:$0xf]
  %v1240 = vld [vmem:[%s8 + $0x68] sm:$0xf]
  %v1241 = vld [vmem:[%s8 + $0x6c] sm:$0xf]
  %v1242 = vld [vmem:[%s8 + $0x70] sm:$0xf]
  %v1243 = vld [vmem:[%s8 + $0x74] sm:$0xf]
  %v1244 = vld [vmem:[%s8 + $0x78] sm:$0xf]
  %v1245 = vld [vmem:[%s8 + $0x7c] sm:$0xf]
  %v1246 = vld [vmem:[%s9] sm:$0x1]
  %v1248 = vlaneseq
  %v1249 = vshrl.u32 %v1248, 7
  %v1250 = vsub.s32 0, %v1249
  %v1251 = vrot.slane %v1246, %v1250
  %v1285 = vunpack.c.l.b16 %v1214
  %v1286 = vunpack.c.l.b16 %v1215
  %v1287 = vunpack.c.l.b16 %v1216
  %v1288 = vunpack.c.l.b16 %v1217
  %v1289 = vunpack.c.l.b16 %v1218
  %v1290 = vunpack.c.l.b16 %v1219
  %v1291 = vunpack.c.l.b16 %v1220
  %v1292 = vunpack.c.l.b16 %v1221
  %v1293 = vunpack.c.l.b16 %v1222
  %v1294 = vunpack.c.l.b16 %v1223
  %v1295 = vunpack.c.l.b16 %v1224
  %v1296 = vunpack.c.l.b16 %v1225
  %v1297 = vunpack.c.l.b16 %v1226
  %v1298 = vunpack.c.l.b16 %v1227
  %v1299 = vunpack.c.l.b16 %v1228
  %v1300 = vunpack.c.l.b16 %v1229
  %v1301 = vunpack.c.l.b16 %v1230
  %v1302 = vunpack.c.l.b16 %v1231
  %v1303 = vunpack.c.l.b16 %v1232
  %v1304 = vunpack.c.l.b16 %v1233
  %v1305 = vunpack.c.l.b16 %v1234
  %v1306 = vunpack.c.l.b16 %v1235
  %v1307 = vunpack.c.l.b16 %v1236
  %v1308 = vunpack.c.l.b16 %v1237
  %v1309 = vunpack.c.l.b16 %v1238
  %v1310 = vunpack.c.l.b16 %v1239
  %v1311 = vunpack.c.l.b16 %v1240
  %v1312 = vunpack.c.l.b16 %v1241
  %v1313 = vunpack.c.l.b16 %v1242
  %v1314 = vunpack.c.l.b16 %v1243
  %v1315 = vunpack.c.l.b16 %v1244
  %v1316 = vunpack.c.l.b16 %v1245
  %v1317 = vpack.c.b16 %v1286, %v1285
  %v1318 = vpack.c.b16 %v1288, %v1287
  %v1319 = vpack.c.b16 %v1290, %v1289
  %v1320 = vpack.c.b16 %v1292, %v1291
  %v1321 = vpack.c.b16 %v1294, %v1293
  %v1322 = vpack.c.b16 %v1296, %v1295
  %v1323 = vpack.c.b16 %v1298, %v1297
  %v1324 = vpack.c.b16 %v1300, %v1299
  %v1325 = vpack.c.b16 %v1302, %v1301
  %v1326 = vpack.c.b16 %v1304, %v1303
  %v1327 = vpack.c.b16 %v1306, %v1305
  %v1328 = vpack.c.b16 %v1308, %v1307
  %v1329 = vpack.c.b16 %v1310, %v1309
  %v1330 = vpack.c.b16 %v1312, %v1311
  %v1331 = vpack.c.b16 %v1314, %v1313
  %v1332 = vpack.c.b16 %v1316, %v1315
  %1349 = vmatprep.subr.bf16.mxu0 0
  %1350 = vmatpush1.bf16.msra.mxu0 %v1317
  %1351 = vmatprep.subr.bf16.mxu0 0
  %1352 = vmatpush1.bf16.msra.mxu0 %v1318
  %1353 = vmatprep.subr.bf16.mxu0 0
  %1354 = vmatpush1.bf16.msra.mxu0 %v1319
  %1355 = vmatprep.subr.bf16.mxu0 0
  %1356 = vmatpush1.bf16.msra.mxu0 %v1320
  %1357 = vmatprep.subr.bf16.mxu0 0
  %1358 = vmatpush1.bf16.msra.mxu0 %v1321
  %1359 = vmatprep.subr.bf16.mxu0 0
  %1360 = vmatpush1.bf16.msra.mxu0 %v1322
  %1361 = vmatprep.subr.bf16.mxu0 0
  %1362 = vmatpush1.bf16.msra.mxu0 %v1323
  %1363 = vmatprep.subr.bf16.mxu0 0
  %1364 = vmatpush1.bf16.msra.mxu0 %v1324
  %1365 = vmatprep.subr.bf16.mxu0 0
  %1366 = vmatpush1.bf16.msra.mxu0 %v1325
  %1367 = vmatprep.subr.bf16.mxu0 0
  %1368 = vmatpush1.bf16.msra.mxu0 %v1326
  %1369 = vmatprep.subr.bf16.mxu0 0
  %1370 = vmatpush1.bf16.msra.mxu0 %v1327
  %1371 = vmatprep.subr.bf16.mxu0 0
  %1372 = vmatpush1.bf16.msra.mxu0 %v1328
  %1373 = vmatprep.subr.bf16.mxu0 0
  %1374 = vmatpush1.bf16.msra.mxu0 %v1329
  %1375 = vmatprep.subr.bf16.mxu0 0
  %1376 = vmatpush1.bf16.msra.mxu0 %v1330
  %1377 = vmatprep.subr.bf16.mxu0 0
  %1378 = vmatpush1.bf16.msra.mxu0 %v1331
  %1379 = vmatprep.subr.bf16.mxu0 0
  %1380 = vmatpush1.bf16.msra.mxu0 %v1332
  %1381 = vmatprep.mubr.bf16.mxu0 %v1038
  %1382 = vmatmul.mubr.bf16.gmra.mrb[0].mxu0 %v1037
  %v1383 = vpop.f32.mrb[0].mxu0
  %v1384 = vadd.f32 %v1251, %v1383
  %v1385 = vpop.f32.mrb[0].mxu0
  %v1386 = vpop.f32.mrb[0].mxu0
  %v1387 = vpop.f32.mrb[0].mxu0
  %1388 = vdwg.mxu0
  %v1389 = vld [vmem:[%s1] sm:$0xff]
  %v1390 = vmul.f32 %v1384, 0.5
  %v1391 = vmul.f32 %v1390, 1.442695
  %v1392 = vpow.pop %v1391
  %v1393 = vmul.f32 %v1389, %v1392
  %v1394 = vadd.f32 %v1209, %v1393
  %v1395 = vpack.c.bf16 %v1394, %v1394
  %v1396 = vld [vmem:[%s10] sm:$0xff]
  %v1397 = vld [vmem:[%s10 + $0x8] sm:$0xff]
  %v1398 = vld [vmem:[%s11] sm:$0x3]
  %v1400 = vlaneseq
  %v1401 = vshrl.u32 %v1400, 7
  %v1402 = vsub.s32 0, %v1401
  %v1403 = vrot.slane %v1398, %v1402
  %v1404 = vlaneseq
  %v1405 = vshrl.u32 %v1404, 7
  %v1406 = vsub.s32 1, %v1405
  %v1407 = vrot.slane %v1398, %v1406
  %v1412 = vunpack.c.l.b16 %v1396
  %v1413 = vunpack.c.h.b16 %v1396
  %v1414 = vunpack.c.l.b16 %v1397
  %v1415 = vunpack.c.h.b16 %v1397
  %v1416 = vpack.c.b16 %v1414, %v1412
  %v1417 = vpack.c.b16 %v1415, %v1413
  %vm1420 = vcmask 130048
  %v1422 = vsel %vm1420, %v1395, 0
  %1424 = vmatprep.subr.bf16.mxu0 %v1417
  %1425 = vmatpush1.bf16.msra.mxu0 %v1416
  %1426 = vmatprep.subr.bf16.mxu0 0
  %1427 = vmatpush1.bf16.msra.mxu0 0
  %1428 = vmatprep.subr.bf16.mxu0 0
  %1429 = vmatpush1.bf16.msra.mxu0 0
  %1430 = vmatprep.subr.bf16.mxu0 0
  %1431 = vmatpush1.bf16.msra.mxu0 0
  %1432 = vmatprep.subr.bf16.mxu0 0
  %1433 = vmatpush1.bf16.msra.mxu0 0
  %1434 = vmatprep.subr.bf16.mxu0 0
  %1435 = vmatpush1.bf16.msra.mxu0 0
  %1436 = vmatprep.subr.bf16.mxu0 0
  %1437 = vmatpush1.bf16.msra.mxu0 0
  %1438 = vmatprep.subr.bf16.mxu0 0
  %1439 = vmatpush1.bf16.msra.mxu0 0
  %1440 = vmatprep.subr.bf16.mxu0 0
  %1441 = vmatpush1.bf16.msra.mxu0 0
  %1442 = vmatprep.subr.bf16.mxu0 0
  %1443 = vmatpush1.bf16.msra.mxu0 0
  %1444 = vmatprep.subr.bf16.mxu0 0
  %1445 = vmatpush1.bf16.msra.mxu0 0
  %1446 = vmatprep.subr.bf16.mxu0 0
  %1447 = vmatpush1.bf16.msra.mxu0 0
  %1448 = vmatprep.subr.bf16.mxu0 0
  %1449 = vmatpush1.bf16.msra.mxu0 0
  %1450 = vmatprep.subr.bf16.mxu0 0
  %1451 = vmatpush1.bf16.msra.mxu0 0
  %1452 = vmatprep.subr.bf16.mxu0 0
  %1453 = vmatpush1.bf16.msra.mxu0 0
  %1454 = vmatprep.subr.bf16.mxu0 0
  %1455 = vmatpush1.bf16.msra.mxu0 0
  %1456 = vmatprep.mubr.bf16.mxu0 0
  %1457 = vmatmul.mubr.bf16.gmra.mrb[0].mxu0 %v1422
  %v1458 = vpop.f32.mrb[0].mxu0
  %v1459 = vadd.f32 %v1403, %v1458
  %v1460 = vpop.f32.mrb[0].mxu0
  %v1461 = vadd.f32 %v1407, %v1460
  %v1462 = vpop.f32.mrb[0].mxu0
  %v1463 = vpop.f32.mrb[0].mxu0
  %1464 = vdwg.mxu0
  %v1465 = vpack.c.bf16 %v1459, %v1459
  %v1466 = vpack.c.bf16 %v1461, %v1461
  %v1467 = vld [vmem:[%s12] sm:$0xff]
  %v1468 = vld [vmem:[%s12 + $0x8] sm:$0xff]
  %v1469 = vld [vmem:[%s12 + $0x10] sm:$0xff]
  %v1470 = vld [vmem:[%s12 + $0x18] sm:$0xff]
  %v1471 = vld [vmem:[%s12 + $0x20] sm:$0xff]
  %v1472 = vld [vmem:[%s12 + $0x28] sm:$0xff]
  %v1473 = vld [vmem:[%s12 + $0x30] sm:$0xff]
  %v1474 = vld [vmem:[%s12 + $0x38] sm:$0xff]
  %v1475 = vld [vmem:[%s12 + $0x40] sm:$0xff]
  %v1476 = vld [vmem:[%s12 + $0x48] sm:$0xff]
  %v1477 = vld [vmem:[%s12 + $0x50] sm:$0xff]
  %v1478 = vld [vmem:[%s12 + $0x58] sm:$0xff]
  %v1479 = vld [vmem:[%s12 + $0x60] sm:$0xff]
  %v1480 = vld [vmem:[%s12 + $0x68] sm:$0xff]
  %v1481 = vld [vmem:[%s12 + $0x70] sm:$0xff]
  %v1482 = vld [vmem:[%s12 + $0x78] sm:$0xff]
  %v1483 = vld [vmem:[%s12 + $0x80] sm:$0xff]
  %v1484 = vld [vmem:[%s12 + $0x88] sm:$0xff]
  %v1485 = vld [vmem:[%s12 + $0x90] sm:$0xff]
  %v1486 = vld [vmem:[%s12 + $0x98] sm:$0xff]
  %v1487 = vld [vmem:[%s12 + $0xa0] sm:$0xff]
  %v1488 = vld [vmem:[%s12 + $0xa8] sm:$0xff]
  %v1489 = vld [vmem:[%s12 + $0xb0] sm:$0xff]
  %v1490 = vld [vmem:[%s12 + $0xb8] sm:$0xff]
  %v1491 = vld [vmem:[%s12 + $0xc0] sm:$0xff]
  %v1492 = vld [vmem:[%s12 + $0xc8] sm:$0xff]
  %v1493 = vld [vmem:[%s12 + $0xd0] sm:$0xff]
  %v1494 = vld [vmem:[%s12 + $0xd8] sm:$0xff]
  %v1495 = vld [vmem:[%s12 + $0xe0] sm:$0xff]
  %v1496 = vld [vmem:[%s12 + $0xe8] sm:$0xff]
  %v1497 = vld [vmem:[%s12 + $0xf0] sm:$0xff]
  %v1498 = vld [vmem:[%s12 + $0xf8] sm:$0xff]
  %v1499 = vld [vmem:[%s12 + $0x100] sm:$0xff]
  %v1500 = vld [vmem:[%s12 + $0x108] sm:$0xff]
  %v1501 = vld [vmem:[%s12 + $0x110] sm:$0xff]
  %v1502 = vld [vmem:[%s12 + $0x118] sm:$0xff]
  %v1503 = vld [vmem:[%s12 + $0x120] sm:$0xff]
  %v1504 = vld [vmem:[%s12 + $0x128] sm:$0xff]
  %v1505 = vld [vmem:[%s12 + $0x130] sm:$0xff]
  %v1506 = vld [vmem:[%s12 + $0x138] sm:$0xff]
  %v1507 = vld [vmem:[%s12 + $0x140] sm:$0xff]
  %v1508 = vld [vmem:[%s12 + $0x148] sm:$0xff]
  %v1509 = vld [vmem:[%s12 + $0x150] sm:$0xff]
  %v1510 = vld [vmem:[%s12 + $0x158] sm:$0xff]
  %v1511 = vld [vmem:[%s12 + $0x160] sm:$0xff]
  %v1512 = vld [vmem:[%s12 + $0x168] sm:$0xff]
  %v1513 = vld [vmem:[%s12 + $0x170] sm:$0xff]
  %v1514 = vld [vmem:[%s12 + $0x178] sm:$0xff]
  %v1515 = vld [vmem:[%s12 + $0x180] sm:$0xff]
  %v1516 = vld [vmem:[%s12 + $0x188] sm:$0xff]
  %v1517 = vld [vmem:[%s12 + $0x190] sm:$0xff]
  %v1518 = vld [vmem:[%s12 + $0x198] sm:$0xff]
  %v1519 = vld [vmem:[%s12 + $0x1a0] sm:$0xff]
  %v1520 = vld [vmem:[%s12 + $0x1a8] sm:$0xff]
  %v1521 = vld [vmem:[%s12 + $0x1b0] sm:$0xff]
  %v1522 = vld [vmem:[%s12 + $0x1b8] sm:$0xff]
  %v1523 = vld [vmem:[%s12 + $0x1c0] sm:$0xff]
  %v1524 = vld [vmem:[%s12 + $0x1c8] sm:$0xff]
  %v1525 = vld [vmem:[%s12 + $0x1d0] sm:$0xff]
  %v1526 = vld [vmem:[%s12 + $0x1d8] sm:$0xff]
  %v1527 = vld [vmem:[%s12 + $0x1e0] sm:$0xff]
  %v1528 = vld [vmem:[%s12 + $0x1e8] sm:$0xff]
  %v1529 = vld [vmem:[%s12 + $0x1f0] sm:$0xff]
  %v1530 = vld [vmem:[%s12 + $0x1f8] sm:$0xff]
  %v1531 = vld [vmem:[%s13] sm:$0xf]
  %v1533 = vlaneseq
  %v1534 = vshrl.u32 %v1533, 7
  %v1535 = vsub.s32 0, %v1534
  %v1536 = vrot.slane %v1531, %v1535
  %v1537 = vlaneseq
  %v1538 = vshrl.u32 %v1537, 7
  %v1539 = vsub.s32 1, %v1538
  %v1540 = vrot.slane %v1531, %v1539
  %v1541 = vlaneseq
  %v1542 = vshrl.u32 %v1541, 7
  %v1543 = vsub.s32 2, %v1542
  %v1544 = vrot.slane %v1531, %v1543
  %v1545 = vlaneseq
  %v1546 = vshrl.u32 %v1545, 7
  %v1547 = vsub.s32 3, %v1546
  %v1548 = vrot.slane %v1531, %v1547
  %v1617 = vunpack.c.l.b16 %v1467
  %v1618 = vunpack.c.h.b16 %v1467
  %v1619 = vunpack.c.l.b16 %v1468
  %v1620 = vunpack.c.h.b16 %v1468
  %v1621 = vunpack.c.l.b16 %v1469
  %v1622 = vunpack.c.h.b16 %v1469
  %v1623 = vunpack.c.l.b16 %v1470
  %v1624 = vunpack.c.h.b16 %v1470
  %v1625 = vunpack.c.l.b16 %v1471
  %v1626 = vunpack.c.h.b16 %v1471
  %v1627 = vunpack.c.l.b16 %v1472
  %v1628 = vunpack.c.h.b16 %v1472
  %v1629 = vunpack.c.l.b16 %v1473
  %v1630 = vunpack.c.h.b16 %v1473
  %v1631 = vunpack.c.l.b16 %v1474
  %v1632 = vunpack.c.h.b16 %v1474
  %v1633 = vunpack.c.l.b16 %v1475
  %v1634 = vunpack.c.h.b16 %v1475
  %v1635 = vunpack.c.l.b16 %v1476
  %v1636 = vunpack.c.h.b16 %v1476
  %v1637 = vunpack.c.l.b16 %v1477
  %v1638 = vunpack.c.h.b16 %v1477
  %v1639 = vunpack.c.l.b16 %v1478
  %v1640 = vunpack.c.h.b16 %v1478
  %v1641 = vunpack.c.l.b16 %v1479
  %v1642 = vunpack.c.h.b16 %v1479
  %v1643 = vunpack.c.l.b16 %v1480
  %v1644 = vunpack.c.h.b16 %v1480
  %v1645 = vunpack.c.l.b16 %v1481
  %v1646 = vunpack.c.h.b16 %v1481
  %v1647 = vunpack.c.l.b16 %v1482
  %v1648 = vunpack.c.h.b16 %v1482
  %v1649 = vunpack.c.l.b16 %v1483
  %v1650 = vunpack.c.h.b16 %v1483
  %v1651 = vunpack.c.l.b16 %v1484
  %v1652 = vunpack.c.h.b16 %v1484
  %v1653 = vunpack.c.l.b16 %v1485
  %v1654 = vunpack.c.h.b16 %v1485
  %v1655 = vunpack.c.l.b16 %v1486
  %v1656 = vunpack.c.h.b16 %v1486
  %v1657 = vunpack.c.l.b16 %v1487
  %v1658 = vunpack.c.h.b16 %v1487
  %v1659 = vunpack.c.l.b16 %v1488
  %v1660 = vunpack.c.h.b16 %v1488
  %v1661 = vunpack.c.l.b16 %v1489
  %v1662 = vunpack.c.h.b16 %v1489
  %v1663 = vunpack.c.l.b16 %v1490
  %v1664 = vunpack.c.h.b16 %v1490
  %v1665 = vunpack.c.l.b16 %v1491
  %v1666 = vunpack.c.h.b16 %v1491
  %v1667 = vunpack.c.l.b16 %v1492
  %v1668 = vunpack.c.h.b16 %v1492
  %v1669 = vunpack.c.l.b16 %v1493
  %v1670 = vunpack.c.h.b16 %v1493
  %v1671 = vunpack.c.l.b16 %v1494
  %v1672 = vunpack.c.h.b16 %v1494
  %v1673 = vunpack.c.l.b16 %v1495
  %v1674 = vunpack.c.h.b16 %v1495
  %v1675 = vunpack.c.l.b16 %v1496
  %v1676 = vunpack.c.h.b16 %v1496
  %v1677 = vunpack.c.l.b16 %v1497
  %v1678 = vunpack.c.h.b16 %v1497
  %v1679 = vunpack.c.l.b16 %v1498
  %v1680 = vunpack.c.h.b16 %v1498
  %v1681 = vunpack.c.l.b16 %v1499
  %v1682 = vunpack.c.h.b16 %v1499
  %v1683 = vunpack.c.l.b16 %v1500
  %v1684 = vunpack.c.h.b16 %v1500
  %v1685 = vunpack.c.l.b16 %v1501
  %v1686 = vunpack.c.h.b16 %v1501
  %v1687 = vunpack.c.l.b16 %v1502
  %v1688 = vunpack.c.h.b16 %v1502
  %v1689 = vunpack.c.l.b16 %v1503
  %v1690 = vunpack.c.h.b16 %v1503
  %v1691 = vunpack.c.l.b16 %v1504
  %v1692 = vunpack.c.h.b16 %v1504
  %v1693 = vunpack.c.l.b16 %v1505
  %v1694 = vunpack.c.h.b16 %v1505
  %v1695 = vunpack.c.l.b16 %v1506
  %v1696 = vunpack.c.h.b16 %v1506
  %v1697 = vunpack.c.l.b16 %v1507
  %v1698 = vunpack.c.h.b16 %v1507
  %v1699 = vunpack.c.l.b16 %v1508
  %v1700 = vunpack.c.h.b16 %v1508
  %v1701 = vunpack.c.l.b16 %v1509
  %v1702 = vunpack.c.h.b16 %v1509
  %v1703 = vunpack.c.l.b16 %v1510
  %v1704 = vunpack.c.h.b16 %v1510
  %v1705 = vunpack.c.l.b16 %v1511
  %v1706 = vunpack.c.h.b16 %v1511
  %v1707 = vunpack.c.l.b16 %v1512
  %v1708 = vunpack.c.h.b16 %v1512
  %v1709 = vunpack.c.l.b16 %v1513
  %v1710 = vunpack.c.h.b16 %v1513
  %v1711 = vunpack.c.l.b16 %v1514
  %v1712 = vunpack.c.h.b16 %v1514
  %v1713 = vunpack.c.l.b16 %v1515
  %v1714 = vunpack.c.h.b16 %v1515
  %v1715 = vunpack.c.l.b16 %v1516
  %v1716 = vunpack.c.h.b16 %v1516
  %v1717 = vunpack.c.l.b16 %v1517
  %v1718 = vunpack.c.h.b16 %v1517
  %v1719 = vunpack.c.l.b16 %v1518
  %v1720 = vunpack.c.h.b16 %v1518
  %v1721 = vunpack.c.l.b16 %v1519
  %v1722 = vunpack.c.h.b16 %v1519
  %v1723 = vunpack.c.l.b16 %v1520
  %v1724 = vunpack.c.h.b16 %v1520
  %v1725 = vunpack.c.l.b16 %v1521
  %v1726 = vunpack.c.h.b16 %v1521
  %v1727 = vunpack.c.l.b16 %v1522
  %v1728 = vunpack.c.h.b16 %v1522
  %v1729 = vunpack.c.l.b16 %v1523
  %v1730 = vunpack.c.h.b16 %v1523
  %v1731 = vunpack.c.l.b16 %v1524
  %v1732 = vunpack.c.h.b16 %v1524
  %v1733 = vunpack.c.l.b16 %v1525
  %v1734 = vunpack.c.h.b16 %v1525
  %v1735 = vunpack.c.l.b16 %v1526
  %v1736 = vunpack.c.h.b16 %v1526
  %v1737 = vunpack.c.l.b16 %v1527
  %v1738 = vunpack.c.h.b16 %v1527
  %v1739 = vunpack.c.l.b16 %v1528
  %v1740 = vunpack.c.h.b16 %v1528
  %v1741 = vunpack.c.l.b16 %v1529
  %v1742 = vunpack.c.h.b16 %v1529
  %v1743 = vunpack.c.l.b16 %v1530
  %v1744 = vunpack.c.h.b16 %v1530
  %v1745 = vpack.c.b16 %v1621, %v1617
  %v1746 = vpack.c.b16 %v1622, %v1618
  %v1747 = vpack.c.b16 %v1623, %v1619
  %v1748 = vpack.c.b16 %v1624, %v1620
  %v1749 = vpack.c.b16 %v1629, %v1625
  %v1750 = vpack.c.b16 %v1630, %v1626
  %v1751 = vpack.c.b16 %v1631, %v1627
  %v1752 = vpack.c.b16 %v1632, %v1628
  %v1753 = vpack.c.b16 %v1637, %v1633
  %v1754 = vpack.c.b16 %v1638, %v1634
  %v1755 = vpack.c.b16 %v1639, %v1635
  %v1756 = vpack.c.b16 %v1640, %v1636
  %v1757 = vpack.c.b16 %v1645, %v1641
  %v1758 = vpack.c.b16 %v1646, %v1642
  %v1759 = vpack.c.b16 %v1647, %v1643
  %v1760 = vpack.c.b16 %v1648, %v1644
  %v1761 = vpack.c.b16 %v1653, %v1649
  %v1762 = vpack.c.b16 %v1654, %v1650
  %v1763 = vpack.c.b16 %v1655, %v1651
  %v1764 = vpack.c.b16 %v1656, %v1652
  %v1765 = vpack.c.b16 %v1661, %v1657
  %v1766 = vpack.c.b16 %v1662, %v1658
  %v1767 = vpack.c.b16 %v1663, %v1659
  %v1768 = vpack.c.b16 %v1664, %v1660
  %v1769 = vpack.c.b16 %v1669, %v1665
  %v1770 = vpack.c.b16 %v1670, %v1666
  %v1771 = vpack.c.b16 %v1671, %v1667
  %v1772 = vpack.c.b16 %v1672, %v1668
  %v1773 = vpack.c.b16 %v1677, %v1673
  %v1774 = vpack.c.b16 %v1678, %v1674
  %v1775 = vpack.c.b16 %v1679, %v1675
  %v1776 = vpack.c.b16 %v1680, %v1676
  %v1777 = vpack.c.b16 %v1685, %v1681
  %v1778 = vpack.c.b16 %v1686, %v1682
  %v1779 = vpack.c.b16 %v1687, %v1683
  %v1780 = vpack.c.b16 %v1688, %v1684
  %v1781 = vpack.c.b16 %v1693, %v1689
  %v1782 = vpack.c.b16 %v1694, %v1690
  %v1783 = vpack.c.b16 %v1695, %v1691
  %v1784 = vpack.c.b16 %v1696, %v1692
  %v1785 = vpack.c.b16 %v1701, %v1697
  %v1786 = vpack.c.b16 %v1702, %v1698
  %v1787 = vpack.c.b16 %v1703, %v1699
  %v1788 = vpack.c.b16 %v1704, %v1700
  %v1789 = vpack.c.b16 %v1709, %v1705
  %v1790 = vpack.c.b16 %v1710, %v1706
  %v1791 = vpack.c.b16 %v1711, %v1707
  %v1792 = vpack.c.b16 %v1712, %v1708
  %v1793 = vpack.c.b16 %v1717, %v1713
  %v1794 = vpack.c.b16 %v1718, %v1714
  %v1795 = vpack.c.b16 %v1719, %v1715
  %v1796 = vpack.c.b16 %v1720, %v1716
  %v1797 = vpack.c.b16 %v1725, %v1721
  %v1798 = vpack.c.b16 %v1726, %v1722
  %v1799 = vpack.c.b16 %v1727, %v1723
  %v1800 = vpack.c.b16 %v1728, %v1724
  %v1801 = vpack.c.b16 %v1733, %v1729
  %v1802 = vpack.c.b16 %v1734, %v1730
  %v1803 = vpack.c.b16 %v1735, %v1731
  %v1804 = vpack.c.b16 %v1736, %v1732
  %v1805 = vpack.c.b16 %v1741, %v1737
  %v1806 = vpack.c.b16 %v1742, %v1738
  %v1807 = vpack.c.b16 %v1743, %v1739
  %v1808 = vpack.c.b16 %v1744, %v1740
  %1873 = vmatprep.subr.bf16.mxu0 %v1746
  %1874 = vmatpush1.bf16.msra.mxu0 %v1745
  %1875 = vmatprep.subr.bf16.mxu0 %v1750
  %1876 = vmatpush1.bf16.msra.mxu0 %v1749
  %1877 = vmatprep.subr.bf16.mxu0 %v1754
  %1878 = vmatpush1.bf16.msra.mxu0 %v1753
  %1879 = vmatprep.subr.bf16.mxu0 %v1758
  %1880 = vmatpush1.bf16.msra.mxu0 %v1757
  %1881 = vmatprep.subr.bf16.mxu0 %v1762
  %1882 = vmatpush1.bf16.msra.mxu0 %v1761
  %1883 = vmatprep.subr.bf16.mxu0 %v1766
  %1884 = vmatpush1.bf16.msra.mxu0 %v1765
  %1885 = vmatprep.subr.bf16.mxu0 %v1770
  %1886 = vmatpush1.bf16.msra.mxu0 %v1769
  %1887 = vmatprep.subr.bf16.mxu0 %v1774
  %1888 = vmatpush1.bf16.msra.mxu0 %v1773
  %1889 = vmatprep.subr.bf16.mxu0 %v1778
  %1890 = vmatpush1.bf16.msra.mxu0 %v1777
  %1891 = vmatprep.subr.bf16.mxu0 %v1782
  %1892 = vmatpush1.bf16.msra.mxu0 %v1781
  %1893 = vmatprep.subr.bf16.mxu0 %v1786
  %1894 = vmatpush1.bf16.msra.mxu0 %v1785
  %1895 = vmatprep.subr.bf16.mxu0 %v1790
  %1896 = vmatpush1.bf16.msra.mxu0 %v1789
  %1897 = vmatprep.subr.bf16.mxu0 %v1794
  %1898 = vmatpush1.bf16.msra.mxu0 %v1793
  %1899 = vmatprep.subr.bf16.mxu0 %v1798
  %1900 = vmatpush1.bf16.msra.mxu0 %v1797
  %1901 = vmatprep.subr.bf16.mxu0 %v1802
  %1902 = vmatpush1.bf16.msra.mxu0 %v1801
  %1903 = vmatprep.subr.bf16.mxu0 %v1806
  %1904 = vmatpush1.bf16.msra.mxu0 %v1805
  %1905 = vmatprep.mubr.bf16.mxu0 %v1466
  %1906 = vmatmul.mubr.bf16.gmra.mrb[0].mxu0 %v1465
  %v1907 = vpop.f32.mrb[0].mxu0
  %v1908 = vadd.f32 %v1536, %v1907
  %v1909 = vpop.f32.mrb[0].mxu0
  %v1910 = vadd.f32 %v1540, %v1909
  %v1911 = vpop.f32.mrb[0].mxu0
  %v1912 = vpop.f32.mrb[0].mxu0
  %1913 = vdwg.mxu0
  %1914 = vmatprep.subr.bf16.mxu0 %v1748
  %1915 = vmatpush1.bf16.msra.mxu0 %v1747
  %1916 = vmatprep.subr.bf16.mxu0 %v1752
  %1917 = vmatpush1.bf16.msra.mxu0 %v1751
  %1918 = vmatprep.subr.bf16.mxu0 %v1756
  %1919 = vmatpush1.bf16.msra.mxu0 %v1755
  %1920 = vmatprep.subr.bf16.mxu0 %v1760
  %1921 = vmatpush1.bf16.msra.mxu0 %v1759
  %1922 = vmatprep.subr.bf16.mxu0 %v1764
  %1923 = vmatpush1.bf16.msra.mxu0 %v1763
  %1924 = vmatprep.subr.bf16.mxu0 %v1768
  %1925 = vmatpush1.bf16.msra.mxu0 %v1767
  %1926 = vmatprep.subr.bf16.mxu0 %v1772
  %1927 = vmatpush1.bf16.msra.mxu0 %v1771
  %1928 = vmatprep.subr.bf16.mxu0 %v1776
  %1929 = vmatpush1.bf16.msra.mxu0 %v1775
  %1930 = vmatprep.subr.bf16.mxu0 %v1780
  %1931 = vmatpush1.bf16.msra.mxu0 %v1779
  %1932 = vmatprep.subr.bf16.mxu0 %v1784
  %1933 = vmatpush1.bf16.msra.mxu0 %v1783
  %1934 = vmatprep.subr.bf16.mxu0 %v1788
  %1935 = vmatpush1.bf16.msra.mxu0 %v1787
  %1936 = vmatprep.subr.bf16.mxu0 %v1792
  %1937 = vmatpush1.bf16.msra.mxu0 %v1791
  %1938 = vmatprep.subr.bf16.mxu0 %v1796
  %1939 = vmatpush1.bf16.msra.mxu0 %v1795
  %1940 = vmatprep.subr.bf16.mxu0 %v1800
  %1941 = vmatpush1.bf16.msra.mxu0 %v1799
  %1942 = vmatprep.subr.bf16.mxu0 %v1804
  %1943 = vmatpush1.bf16.msra.mxu0 %v1803
  %1944 = vmatprep.subr.bf16.mxu0 %v1808
  %1945 = vmatpush1.bf16.msra.mxu0 %v1807
  %1946 = vmatprep.mubr.bf16.mxu0 %v1466
  %1947 = vmatmul.mubr.bf16.gmra.mrb[0].mxu0 %v1465
  %v1948 = vpop.f32.mrb[0].mxu0
  %v1949 = vadd.f32 %v1544, %v1948
  %v1950 = vpop.f32.mrb[0].mxu0
  %v1951 = vadd.f32 %v1548, %v1950
  %v1952 = vpop.f32.mrb[0].mxu0
  %v1953 = vpop.f32.mrb[0].mxu0
  %1954 = vdwg.mxu0
  %v1955 = vmax.f32 %v1908, 0.0
  %v1956 = vmax.f32 %v1910, 0.0
  %v1957 = vmax.f32 %v1949, 0.0
  %v1958 = vmax.f32 %v1951, 0.0
  %v1959 = vpack.c.bf16 %v1955, %v1955
  %v1960 = vpack.c.bf16 %v1956, %v1956
  %v1961 = vpack.c.bf16 %v1957, %v1957
  %v1962 = vpack.c.bf16 %v1958, %v1958
  %v1963 = vld [vmem:[%s14] sm:$0xff]
  %v1964 = vld [vmem:[%s14 + $0x8] sm:$0xff]
  %v1965 = vld [vmem:[%s14 + $0x10] sm:$0xff]
  %v1966 = vld [vmem:[%s14 + $0x18] sm:$0xff]
  %v1967 = vld [vmem:[%s14 + $0x20] sm:$0xff]
  %v1968 = vld [vmem:[%s14 + $0x28] sm:$0xff]
  %v1969 = vld [vmem:[%s14 + $0x30] sm:$0xff]
  %v1970 = vld [vmem:[%s14 + $0x38] sm:$0xff]
  %v1971 = vld [vmem:[%s14 + $0x40] sm:$0xff]
  %v1972 = vld [vmem:[%s14 + $0x48] sm:$0xff]
  %v1973 = vld [vmem:[%s14 + $0x50] sm:$0xff]
  %v1974 = vld [vmem:[%s14 + $0x58] sm:$0xff]
  %v1975 = vld [vmem:[%s14 + $0x60] sm:$0xff]
  %v1976 = vld [vmem:[%s14 + $0x68] sm:$0xff]
  %v1977 = vld [vmem:[%s14 + $0x70] sm:$0xff]
  %v1978 = vld [vmem:[%s14 + $0x78] sm:$0xff]
  %v1979 = vld [vmem:[%s14 + $0x80] sm:$0xff]
  %v1980 = vld [vmem:[%s14 + $0x88] sm:$0xff]
  %v1981 = vld [vmem:[%s14 + $0x90] sm:$0xff]
  %v1982 = vld [vmem:[%s14 + $0x98] sm:$0xff]
  %v1983 = vld [vmem:[%s14 + $0xa0] sm:$0xff]
  %v1984 = vld [vmem:[%s14 + $0xa8] sm:$0xff]
  %v1985 = vld [vmem:[%s14 + $0xb0] sm:$0xff]
  %v1986 = vld [vmem:[%s14 + $0xb8] sm:$0xff]
  %v1987 = vld [vmem:[%s14 + $0xc0] sm:$0xff]
  %v1988 = vld [vmem:[%s14 + $0xc8] sm:$0xff]
  %v1989 = vld [vmem:[%s14 + $0xd0] sm:$0xff]
  %v1990 = vld [vmem:[%s14 + $0xd8] sm:$0xff]
  %v1991 = vld [vmem:[%s14 + $0xe0] sm:$0xff]
  %v1992 = vld [vmem:[%s14 + $0xe8] sm:$0xff]
  %v1993 = vld [vmem:[%s14 + $0xf0] sm:$0xff]
  %v1994 = vld [vmem:[%s14 + $0xf8] sm:$0xff]
  %v1995 = vld [vmem:[%s14 + $0x100] sm:$0xff]
  %v1996 = vld [vmem:[%s14 + $0x108] sm:$0xff]
  %v1997 = vld [vmem:[%s14 + $0x110] sm:$0xff]
  %v1998 = vld [vmem:[%s14 + $0x118] sm:$0xff]
  %v1999 = vld [vmem:[%s14 + $0x120] sm:$0xff]
  %v2000 = vld [vmem:[%s14 + $0x128] sm:$0xff]
  %v2001 = vld [vmem:[%s14 + $0x130] sm:$0xff]
  %v2002 = vld [vmem:[%s14 + $0x138] sm:$0xff]
  %v2003 = vld [vmem:[%s14 + $0x140] sm:$0xff]
  %v2004 = vld [vmem:[%s14 + $0x148] sm:$0xff]
  %v2005 = vld [vmem:[%s14 + $0x150] sm:$0xff]
  %v2006 = vld [vmem:[%s14 + $0x158] sm:$0xff]
  %v2007 = vld [vmem:[%s14 + $0x160] sm:$0xff]
  %v2008 = vld [vmem:[%s14 + $0x168] sm:$0xff]
  %v2009 = vld [vmem:[%s14 + $0x170] sm:$0xff]
  %v2010 = vld [vmem:[%s14 + $0x178] sm:$0xff]
  %v2011 = vld [vmem:[%s14 + $0x180] sm:$0xff]
  %v2012 = vld [vmem:[%s14 + $0x188] sm:$0xff]
  %v2013 = vld [vmem:[%s14 + $0x190] sm:$0xff]
  %v2014 = vld [vmem:[%s14 + $0x198] sm:$0xff]
  %v2015 = vld [vmem:[%s14 + $0x1a0] sm:$0xff]
  %v2016 = vld [vmem:[%s14 + $0x1a8] sm:$0xff]
  %v2017 = vld [vmem:[%s14 + $0x1b0] sm:$0xff]
  %v2018 = vld [vmem:[%s14 + $0x1b8] sm:$0xff]
  %v2019 = vld [vmem:[%s14 + $0x1c0] sm:$0xff]
  %v2020 = vld [vmem:[%s14 + $0x1c8] sm:$0xff]
  %v2021 = vld [vmem:[%s14 + $0x1d0] sm:$0xff]
  %v2022 = vld [vmem:[%s14 + $0x1d8] sm:$0xff]
  %v2023 = vld [vmem:[%s14 + $0x1e0] sm:$0xff]
  %v2024 = vld [vmem:[%s14 + $0x1e8] sm:$0xff]
  %v2025 = vld [vmem:[%s14 + $0x1f0] sm:$0xff]
  %v2026 = vld [vmem:[%s14 + $0x1f8] sm:$0xff]
  %v2027 = vld [vmem:[%s15] sm:$0x3]
  %v2029 = vlaneseq
  %v2030 = vshrl.u32 %v2029, 7
  %v2031 = vsub.s32 0, %v2030
  %v2032 = vrot.slane %v2027, %v2031
  %v2033 = vlaneseq
  %v2034 = vshrl.u32 %v2033, 7
  %v2035 = vsub.s32 1, %v2034
  %v2036 = vrot.slane %v2027, %v2035
  %v2103 = vunpack.c.l.b16 %v1963
  %v2104 = vunpack.c.h.b16 %v1963
  %v2105 = vunpack.c.l.b16 %v1964
  %v2106 = vunpack.c.h.b16 %v1964
  %v2107 = vunpack.c.l.b16 %v1965
  %v2108 = vunpack.c.h.b16 %v1965
  %v2109 = vunpack.c.l.b16 %v1966
  %v2110 = vunpack.c.h.b16 %v1966
  %v2111 = vunpack.c.l.b16 %v1967
  %v2112 = vunpack.c.h.b16 %v1967
  %v2113 = vunpack.c.l.b16 %v1968
  %v2114 = vunpack.c.h.b16 %v1968
  %v2115 = vunpack.c.l.b16 %v1969
  %v2116 = vunpack.c.h.b16 %v1969
  %v2117 = vunpack.c.l.b16 %v1970
  %v2118 = vunpack.c.h.b16 %v1970
  %v2119 = vunpack.c.l.b16 %v1971
  %v2120 = vunpack.c.h.b16 %v1971
  %v2121 = vunpack.c.l.b16 %v1972
  %v2122 = vunpack.c.h.b16 %v1972
  %v2123 = vunpack.c.l.b16 %v1973
  %v2124 = vunpack.c.h.b16 %v1973
  %v2125 = vunpack.c.l.b16 %v1974
  %v2126 = vunpack.c.h.b16 %v1974
  %v2127 = vunpack.c.l.b16 %v1975
  %v2128 = vunpack.c.h.b16 %v1975
  %v2129 = vunpack.c.l.b16 %v1976
  %v2130 = vunpack.c.h.b16 %v1976
  %v2131 = vunpack.c.l.b16 %v1977
  %v2132 = vunpack.c.h.b16 %v1977
  %v2133 = vunpack.c.l.b16 %v1978
  %v2134 = vunpack.c.h.b16 %v1978
  %v2135 = vunpack.c.l.b16 %v1979
  %v2136 = vunpack.c.h.b16 %v1979
  %v2137 = vunpack.c.l.b16 %v1980
  %v2138 = vunpack.c.h.b16 %v1980
  %v2139 = vunpack.c.l.b16 %v1981
  %v2140 = vunpack.c.h.b16 %v1981
  %v2141 = vunpack.c.l.b16 %v1982
  %v2142 = vunpack.c.h.b16 %v1982
  %v2143 = vunpack.c.l.b16 %v1983
  %v2144 = vunpack.c.h.b16 %v1983
  %v2145 = vunpack.c.l.b16 %v1984
  %v2146 = vunpack.c.h.b16 %v1984
  %v2147 = vunpack.c.l.b16 %v1985
  %v2148 = vunpack.c.h.b16 %v1985
  %v2149 = vunpack.c.l.b16 %v1986
  %v2150 = vunpack.c.h.b16 %v1986
  %v2151 = vunpack.c.l.b16 %v1987
  %v2152 = vunpack.c.h.b16 %v1987
  %v2153 = vunpack.c.l.b16 %v1988
  %v2154 = vunpack.c.h.b16 %v1988
  %v2155 = vunpack.c.l.b16 %v1989
  %v2156 = vunpack.c.h.b16 %v1989
  %v2157 = vunpack.c.l.b16 %v1990
  %v2158 = vunpack.c.h.b16 %v1990
  %v2159 = vunpack.c.l.b16 %v1991
  %v2160 = vunpack.c.h.b16 %v1991
  %v2161 = vunpack.c.l.b16 %v1992
  %v2162 = vunpack.c.h.b16 %v1992
  %v2163 = vunpack.c.l.b16 %v1993
  %v2164 = vunpack.c.h.b16 %v1993
  %v2165 = vunpack.c.l.b16 %v1994
  %v2166 = vunpack.c.h.b16 %v1994
  %v2167 = vunpack.c.l.b16 %v1995
  %v2168 = vunpack.c.h.b16 %v1995
  %v2169 = vunpack.c.l.b16 %v1996
  %v2170 = vunpack.c.h.b16 %v1996
  %v2171 = vunpack.c.l.b16 %v1997
  %v2172 = vunpack.c.h.b16 %v1997
  %v2173 = vunpack.c.l.b16 %v1998
  %v2174 = vunpack.c.h.b16 %v1998
  %v2175 = vunpack.c.l.b16 %v1999
  %v2176 = vunpack.c.h.b16 %v1999
  %v2177 = vunpack.c.l.b16 %v2000
  %v2178 = vunpack.c.h.b16 %v2000
  %v2179 = vunpack.c.l.b16 %v2001
  %v2180 = vunpack.c.h.b16 %v2001
  %v2181 = vunpack.c.l.b16 %v2002
  %v2182 = vunpack.c.h.b16 %v2002
  %v2183 = vunpack.c.l.b16 %v2003
  %v2184 = vunpack.c.h.b16 %v2003
  %v2185 = vunpack.c.l.b16 %v2004
  %v2186 = vunpack.c.h.b16 %v2004
  %v2187 = vunpack.c.l.b16 %v2005
  %v2188 = vunpack.c.h.b16 %v2005
  %v2189 = vunpack.c.l.b16 %v2006
  %v2190 = vunpack.c.h.b16 %v2006
  %v2191 = vunpack.c.l.b16 %v2007
  %v2192 = vunpack.c.h.b16 %v2007
  %v2193 = vunpack.c.l.b16 %v2008
  %v2194 = vunpack.c.h.b16 %v2008
  %v2195 = vunpack.c.l.b16 %v2009
  %v2196 = vunpack.c.h.b16 %v2009
  %v2197 = vunpack.c.l.b16 %v2010
  %v2198 = vunpack.c.h.b16 %v2010
  %v2199 = vunpack.c.l.b16 %v2011
  %v2200 = vunpack.c.h.b16 %v2011
  %v2201 = vunpack.c.l.b16 %v2012
  %v2202 = vunpack.c.h.b16 %v2012
  %v2203 = vunpack.c.l.b16 %v2013
  %v2204 = vunpack.c.h.b16 %v2013
  %v2205 = vunpack.c.l.b16 %v2014
  %v2206 = vunpack.c.h.b16 %v2014
  %v2207 = vunpack.c.l.b16 %v2015
  %v2208 = vunpack.c.h.b16 %v2015
  %v2209 = vunpack.c.l.b16 %v2016
  %v2210 = vunpack.c.h.b16 %v2016
  %v2211 = vunpack.c.l.b16 %v2017
  %v2212 = vunpack.c.h.b16 %v2017
  %v2213 = vunpack.c.l.b16 %v2018
  %v2214 = vunpack.c.h.b16 %v2018
  %v2215 = vunpack.c.l.b16 %v2019
  %v2216 = vunpack.c.h.b16 %v2019
  %v2217 = vunpack.c.l.b16 %v2020
  %v2218 = vunpack.c.h.b16 %v2020
  %v2219 = vunpack.c.l.b16 %v2021
  %v2220 = vunpack.c.h.b16 %v2021
  %v2221 = vunpack.c.l.b16 %v2022
  %v2222 = vunpack.c.h.b16 %v2022
  %v2223 = vunpack.c.l.b16 %v2023
  %v2224 = vunpack.c.h.b16 %v2023
  %v2225 = vunpack.c.l.b16 %v2024
  %v2226 = vunpack.c.h.b16 %v2024
  %v2227 = vunpack.c.l.b16 %v2025
  %v2228 = vunpack.c.h.b16 %v2025
  %v2229 = vunpack.c.l.b16 %v2026
  %v2230 = vunpack.c.h.b16 %v2026
  %v2231 = vpack.c.b16 %v2105, %v2103
  %v2232 = vpack.c.b16 %v2106, %v2104
  %v2233 = vpack.c.b16 %v2109, %v2107
  %v2234 = vpack.c.b16 %v2110, %v2108
  %v2235 = vpack.c.b16 %v2113, %v2111
  %v2236 = vpack.c.b16 %v2114, %v2112
  %v2237 = vpack.c.b16 %v2117, %v2115
  %v2238 = vpack.c.b16 %v2118, %v2116
  %v2239 = vpack.c.b16 %v2121, %v2119
  %v2240 = vpack.c.b16 %v2122, %v2120
  %v2241 = vpack.c.b16 %v2125, %v2123
  %v2242 = vpack.c.b16 %v2126, %v2124
  %v2243 = vpack.c.b16 %v2129, %v2127
  %v2244 = vpack.c.b16 %v2130, %v2128
  %v2245 = vpack.c.b16 %v2133, %v2131
  %v2246 = vpack.c.b16 %v2134, %v2132
  %v2247 = vpack.c.b16 %v2137, %v2135
  %v2248 = vpack.c.b16 %v2138, %v2136
  %v2249 = vpack.c.b16 %v2141, %v2139
  %v2250 = vpack.c.b16 %v2142, %v2140
  %v2251 = vpack.c.b16 %v2145, %v2143
  %v2252 = vpack.c.b16 %v2146, %v2144
  %v2253 = vpack.c.b16 %v2149, %v2147
  %v2254 = vpack.c.b16 %v2150, %v2148
  %v2255 = vpack.c.b16 %v2153, %v2151
  %v2256 = vpack.c.b16 %v2154, %v2152
  %v2257 = vpack.c.b16 %v2157, %v2155
  %v2258 = vpack.c.b16 %v2158, %v2156
  %v2259 = vpack.c.b16 %v2161, %v2159
  %v2260 = vpack.c.b16 %v2162, %v2160
  %v2261 = vpack.c.b16 %v2165, %v2163
  %v2262 = vpack.c.b16 %v2166, %v2164
  %v2263 = vpack.c.b16 %v2169, %v2167
  %v2264 = vpack.c.b16 %v2170, %v2168
  %v2265 = vpack.c.b16 %v2173, %v2171
  %v2266 = vpack.c.b16 %v2174, %v2172
  %v2267 = vpack.c.b16 %v2177, %v2175
  %v2268 = vpack.c.b16 %v2178, %v2176
  %v2269 = vpack.c.b16 %v2181, %v2179
  %v2270 = vpack.c.b16 %v2182, %v2180
  %v2271 = vpack.c.b16 %v2185, %v2183
  %v2272 = vpack.c.b16 %v2186, %v2184
  %v2273 = vpack.c.b16 %v2189, %v2187
  %v2274 = vpack.c.b16 %v2190, %v2188
  %v2275 = vpack.c.b16 %v2193, %v2191
  %v2276 = vpack.c.b16 %v2194, %v2192
  %v2277 = vpack.c.b16 %v2197, %v2195
  %v2278 = vpack.c.b16 %v2198, %v2196
  %v2279 = vpack.c.b16 %v2201, %v2199
  %v2280 = vpack.c.b16 %v2202, %v2200
  %v2281 = vpack.c.b16 %v2205, %v2203
  %v2282 = vpack.c.b16 %v2206, %v2204
  %v2283 = vpack.c.b16 %v2209, %v2207
  %v2284 = vpack.c.b16 %v2210, %v2208
  %v2285 = vpack.c.b16 %v2213, %v2211
  %v2286 = vpack.c.b16 %v2214, %v2212
  %v2287 = vpack.c.b16 %v2217, %v2215
  %v2288 = vpack.c.b16 %v2218, %v2216
  %v2289 = vpack.c.b16 %v2221, %v2219
  %v2290 = vpack.c.b16 %v2222, %v2220
  %v2291 = vpack.c.b16 %v2225, %v2223
  %v2292 = vpack.c.b16 %v2226, %v2224
  %v2293 = vpack.c.b16 %v2229, %v2227
  %v2294 = vpack.c.b16 %v2230, %v2228
  %2359 = vmatprep.subr.bf16.mxu0 %v2232
  %2360 = vmatpush1.bf16.msra.mxu0 %v2231
  %2361 = vmatprep.subr.bf16.mxu0 %v2234
  %2362 = vmatpush1.bf16.msra.mxu0 %v2233
  %2363 = vmatprep.subr.bf16.mxu0 %v2236
  %2364 = vmatpush1.bf16.msra.mxu0 %v2235
  %2365 = vmatprep.subr.bf16.mxu0 %v2238
  %2366 = vmatpush1.bf16.msra.mxu0 %v2237
  %2367 = vmatprep.subr.bf16.mxu0 %v2240
  %2368 = vmatpush1.bf16.msra.mxu0 %v2239
  %2369 = vmatprep.subr.bf16.mxu0 %v2242
  %2370 = vmatpush1.bf16.msra.mxu0 %v2241
  %2371 = vmatprep.subr.bf16.mxu0 %v2244
  %2372 = vmatpush1.bf16.msra.mxu0 %v2243
  %2373 = vmatprep.subr.bf16.mxu0 %v2246
  %2374 = vmatpush1.bf16.msra.mxu0 %v2245
  %2375 = vmatprep.subr.bf16.mxu0 %v2248
  %2376 = vmatpush1.bf16.msra.mxu0 %v2247
  %2377 = vmatprep.subr.bf16.mxu0 %v2250
  %2378 = vmatpush1.bf16.msra.mxu0 %v2249
  %2379 = vmatprep.subr.bf16.mxu0 %v2252
  %2380 = vmatpush1.bf16.msra.mxu0 %v2251
  %2381 = vmatprep.subr.bf16.mxu0 %v2254
  %2382 = vmatpush1.bf16.msra.mxu0 %v2253
  %2383 = vmatprep.subr.bf16.mxu0 %v2256
  %2384 = vmatpush1.bf16.msra.mxu0 %v2255
  %2385 = vmatprep.subr.bf16.mxu0 %v2258
  %2386 = vmatpush1.bf16.msra.mxu0 %v2257
  %2387 = vmatprep.subr.bf16.mxu0 %v2260
  %2388 = vmatpush1.bf16.msra.mxu0 %v2259
  %2389 = vmatprep.subr.bf16.mxu0 %v2262
  %2390 = vmatpush1.bf16.msra.mxu0 %v2261
  %2391 = vmatprep.mubr.bf16.mxu0 %v1960
  %2392 = vmatmul.mubr.bf16.gmra.mrb[0].mxu0 %v1959
  %v2393 = vpop.f32.mrb[0].mxu0
  %v2394 = vadd.f32 %v2032, %v2393
  %v2395 = vpop.f32.mrb[0].mxu0
  %v2396 = vadd.f32 %v2036, %v2395
  %v2397 = vpop.f32.mrb[0].mxu0
  %v2398 = vpop.f32.mrb[0].mxu0
  %2399 = vdwg.mxu0
  %2400 = vmatprep.subr.bf16.mxu0 %v2264
  %2401 = vmatpush1.bf16.msra.mxu0 %v2263
  %2402 = vmatprep.subr.bf16.mxu0 %v2266
  %2403 = vmatpush1.bf16.msra.mxu0 %v2265
  %2404 = vmatprep.subr.bf16.mxu0 %v2268
  %2405 = vmatpush1.bf16.msra.mxu0 %v2267
  %2406 = vmatprep.subr.bf16.mxu0 %v2270
  %2407 = vmatpush1.bf16.msra.mxu0 %v2269
  %2408 = vmatprep.subr.bf16.mxu0 %v2272
  %2409 = vmatpush1.bf16.msra.mxu0 %v2271
  %2410 = vmatprep.subr.bf16.mxu0 %v2274
  %2411 = vmatpush1.bf16.msra.mxu0 %v2273
  %2412 = vmatprep.subr.bf16.mxu0 %v2276
  %2413 = vmatpush1.bf16.msra.mxu0 %v2275
  %2414 = vmatprep.subr.bf16.mxu0 %v2278
  %2415 = vmatpush1.bf16.msra.mxu0 %v2277
  %2416 = vmatprep.subr.bf16.mxu0 %v2280
  %2417 = vmatpush1.bf16.msra.mxu0 %v2279
  %2418 = vmatprep.subr.bf16.mxu0 %v2282
  %2419 = vmatpush1.bf16.msra.mxu0 %v2281
  %2420 = vmatprep.subr.bf16.mxu0 %v2284
  %2421 = vmatpush1.bf16.msra.mxu0 %v2283
  %2422 = vmatprep.subr.bf16.mxu0 %v2286
  %2423 = vmatpush1.bf16.msra.mxu0 %v2285
  %2424 = vmatprep.subr.bf16.mxu0 %v2288
  %2425 = vmatpush1.bf16.msra.mxu0 %v2287
  %2426 = vmatprep.subr.bf16.mxu0 %v2290
  %2427 = vmatpush1.bf16.msra.mxu0 %v2289
  %2428 = vmatprep.subr.bf16.mxu0 %v2292
  %2429 = vmatpush1.bf16.msra.mxu0 %v2291
  %2430 = vmatprep.subr.bf16.mxu0 %v2294
  %2431 = vmatpush1.bf16.msra.mxu0 %v2293
  %2432 = vmatprep.mubr.bf16.mxu0 %v1962
  %2433 = vmatmul.mubr.bf16.gmra.mrb[0].mxu0 %v1961
  %v2434 = vpop.f32.mrb[0].mxu0
  %v2435 = vadd.f32 %v2394, %v2434
  %v2436 = vpop.f32.mrb[0].mxu0
  %v2437 = vadd.f32 %v2396, %v2436
  %v2438 = vpop.f32.mrb[0].mxu0
  %v2439 = vpop.f32.mrb[0].mxu0
  %2440 = vdwg.mxu0
  %v2441 = vxor.u32 %v2435, 2147483648
  %v2442 = vxor.u32 %v2437, 2147483648
  %v2443 = vmul.f32 %v2441, 1.442695
  %v2444 = vpow.pop %v2443
  %v2445 = vmul.f32 %v2442, 1.442695
  %v2446 = vpow.pop %v2445
  %v2447 = vadd.f32 %v2444, 1.0
  %v2448 = vadd.f32 %v2446, 1.0
  %v2449 = vrcp.pop %v2447
  %v2450 = vmul.f32 1.0, %v2449
  %v2451 = vrcp.pop %v2448
  %v2452 = vmul.f32 1.0, %v2451
  %2453 = vst [vmem:[%s16] sm:$0xff] %v2450
  %2454 = vst [vmem:[%s16 + $0x8] sm:$0xff] %v2452
  %2455 = vst.msk [vmem:[%s17] sm:$0xff] %vm1420, %v1209
  %2456 = vst.msk [vmem:[%s18] sm:$0xff] %vm1420, %v1384
  // Predicated region
  $region66: #{ae_forward.1} parent=0 // pred_check
    _
  $region67: #{ae_forward.1} parent=0 // pred_check_branch
    %2458 = sbr.rel (0) target = $region69
  $region68: #{ae_forward.1} parent=0 // pred_region
    _
  $region69: #{ae_forward.1} parent=0 // pred_fallthru
    _
  // Predicated region
  $region70: #{ae_forward.1} parent=0 // pred_check
    _
  $region71: #{ae_forward.1} parent=0 // pred_check_branch
    %2460 = sbr.rel (0) target = $region73
  $region72: #{ae_forward.1} parent=0 // pred_region
    _
  $region73: #{ae_forward.1} parent=0 // pred_fallthru
    _
  // Predicated region
  $region74: #{ae_forward.1} parent=0 // pred_check
    _
  $region75: #{ae_forward.1} parent=0 // pred_check_branch
    %2462 = sbr.rel (0) target = $region77
  $region76: #{ae_forward.1} parent=0 // pred_region
    _
  $region77: #{ae_forward.1} parent=0 // pred_fallthru
    _
  // Predicated region
  $region78: #{ae_forward.1} parent=0 // pred_check
    _
  $region79: #{ae_forward.1} parent=0 // pred_check_branch
    %2464 = sbr.rel (0) target = $region81
  $region80: #{ae_forward.1} parent=0 // pred_region
    _
  $region81: #{ae_forward.1} parent=0 // pred_fallthru
    _
  // Predicated region
  $region82: #{ae_forward.1} parent=0 // pred_check
    _
  $region83: #{ae_forward.1} parent=0 // pred_check_branch
    %2466 = sbr.rel (0) target = $region85
  $region84: #{ae_forward.1} parent=0 // pred_region
    _
  $region85: #{ae_forward.1} parent=0 // pred_fallthru
    _
  // Predicated region
  $region86: #{ae_forward.1} parent=0 // pred_check
    _
  $region87: #{ae_forward.1} parent=0 // pred_check_branch
    %2468 = sbr.rel (0) target = $region89
  $region88: #{ae_forward.1} parent=0 // pred_region
    _
  $region89: #{ae_forward.1} parent=0 // pred_fallthru
    _

</llo_original>
